<compile_context>
chip_gen: v5e
topology: v5e:2x2
jax: 0.10.0
libtpu: 0.0.40
codegen_flags: <defaults>
</compile_context>

<pallas_src>
import functools

import jax
import jax.numpy as jnp
from jax import lax
from jax.experimental import pallas as pl
from jax.experimental.pallas import tpu as pltpu


_LANE = 128
_SUB = 8


def _round_up(v, m):
    return ((v + m - 1) // m) * m


def _pad2d(a, rows, cols):
    r, c = a.shape
    if r == rows and c == cols:
        return a
    return jnp.pad(a, ((0, rows - r), (0, cols - c)))


def _vmem_budget():
    """Generation-aware scoped-VMEM budget (bytes)."""
    cap = 64 * 1024 * 1024
    try:
        cap = int(getattr(pltpu.get_tpu_info(), "vmem_capacity_bytes", cap))
    except Exception:
        pass
    return int(max(32 * 1024 * 1024, min(cap * 3 // 4, 96 * 1024 * 1024)))


# --------------------------------------------------------------------------
# Fused bottleneck kernel (one image per grid step)
# --------------------------------------------------------------------------

def _conv_stack(xs_ref, mask_ref, w1_ref, b1_ref, w2_ref, b2_ref, w3_ref,
                b3_ref, y1_scr, *, wpad, rout):
    """conv1+bn1+relu -> conv2(3x3)+bn2+relu -> conv3+bn3 for one image.

    Raster layout: input pixel (h, w) at flat row (2+h)*wpad + w; output
    pixel (h, w) produced at flat row h*wpad + w.  The 3x3 conv is 9
    accumulated MXU dots over statically row-shifted views of y1.
    """
    # conv1 (1x1, stride already applied via sub-sampling) + bn1 + relu.
    y1 = jnp.dot(xs_ref[0], w1_ref[...], preferred_element_type=jnp.float32)
    y1 = jnp.maximum(y1 + b1_ref[...], 0.0)
    # Zero the raster padding rows/columns so they act as conv2 zero-padding
    # (otherwise they would carry relu(shift1)).
    y1_scr[...] = y1 * mask_ref[...]

    # conv2 (3x3, pad 1) as 9 shifted dots accumulated in f32, + bn2 + relu.
    acc = None
    for dy in range(3):
        for dx in range(3):
            off = (dy + 1) * wpad + (dx - 1)
            d = jnp.dot(y1_scr[off:off + rout, :], w2_ref[dy * 3 + dx],
                        preferred_element_type=jnp.float32)
            acc = d if acc is None else acc + d
    y2 = jnp.maximum(acc + b2_ref[...], 0.0)

    # conv3 (1x1) + bn3 (residual + relu handled by the caller).
    return jnp.dot(y2, w3_ref[...], preferred_element_type=jnp.float32) + b3_ref[...]


def _bottleneck_kernel_id(xs_ref, mask_ref, w1_ref, b1_ref, w2_ref, b2_ref,
                          w3_ref, b3_ref, o_ref, y1_scr, *, wpad, rout):
    y3 = _conv_stack(xs_ref, mask_ref, w1_ref, b1_ref, w2_ref, b2_ref,
                     w3_ref, b3_ref, y1_scr, wpad=wpad, rout=rout)
    res = xs_ref[0, 2 * wpad:2 * wpad + rout, :].astype(jnp.float32)
    o_ref[0] = jnp.maximum(y3 + res, 0.0).astype(o_ref.dtype)


def _bottleneck_kernel_ds(xs_ref, mask_ref, w1_ref, b1_ref, w2_ref, b2_ref,
                          w3_ref, b3_ref, wd_ref, bd_ref, o_ref, y1_scr, *,
                          wpad, rout):
    y3 = _conv_stack(xs_ref, mask_ref, w1_ref, b1_ref, w2_ref, b2_ref,
                     w3_ref, b3_ref, y1_scr, wpad=wpad, rout=rout)
    xs_res = xs_ref[0, 2 * wpad:2 * wpad + rout, :]
    res = jnp.dot(xs_res, wd_ref[...], preferred_element_type=jnp.float32)
    o_ref[0] = jnp.maximum(y3 + res + bd_ref[...], 0.0).astype(o_ref.dtype)


# --------------------------------------------------------------------------
# Bottleneck forward wrapper (eval-mode BN folded into weights / shifts)
# --------------------------------------------------------------------------

def bottleneck_forward(x_nchw, p, stride=1, eps=1e-5):
    N, Cin, H, W = x_nchw.shape
    planes = p["conv1_w"].shape[0]
    cout = p["conv3_w"].shape[0]
    has_ds = p.get("ds_w") is not None
    if not has_ds:
        assert stride == 1 and Cin == cout, "identity residual needs matching shapes"

    # conv1 is 1x1 with stride -> striding == spatial sub-sampling of x.
    x_nhwc = jnp.transpose(x_nchw, (0, 2, 3, 1))
    x_s = x_nhwc[:, ::stride, ::stride, :]
    Hs, Ws = x_s.shape[1], x_s.shape[2]

    Cinp = _round_up(Cin, _LANE)
    Pp = _round_up(planes, _LANE)
    Coutp = _round_up(cout, _LANE)
    Wpad = _round_up(Ws + 2, _SUB)   # >= Ws+2: right zero-cols also act as left pad (wrap)
    Rin = (Hs + 4) * Wpad            # 2 leading + 2 trailing zero rows
    Rout = Hs * Wpad

    # Zero-padded raster per image: channel pad to a lane multiple + spatial halo.
    xs_raster = jnp.pad(
        x_s, ((0, 0), (2, 2), (0, Wpad - Ws), (0, Cinp - Cin))
    ).reshape(N, Rin, Cinp)

    # Raster-row validity mask (zeroes conv1 output at padding positions).
    r = jnp.arange(Rin, dtype=jnp.int32)
    mask = ((r >= 2 * Wpad) & (r < (2 + Hs) * Wpad) & (r % Wpad < Ws))
    mask = mask.astype(jnp.float32).reshape(Rin, 1)

    # Fold conv bias + eval-mode BN into weight columns and a per-channel shift.
    def fold_1x1(w, b, g, beta, mean, var, kin, kout, kin_p, kout_p):
        s = g * lax.rsqrt(var + eps)
        wf = w.reshape(kout, kin).T * s[None, :]
        sh = b * s + beta - mean * s
        return _pad2d(wf, kin_p, kout_p), _pad2d(sh.reshape(1, kout), 1, kout_p)

    w1, b1 = fold_1x1(p["conv1_w"], p["conv1_b"], p["bn1_gamma"], p["bn1_beta"],
                      p["bn1_mean"], p["bn1_var"], Cin, planes, Cinp, Pp)
    w3, b3 = fold_1x1(p["conv3_w"], p["conv3_b"], p["bn3_gamma"], p["bn3_beta"],
                      p["bn3_mean"], p["bn3_var"], planes, cout, Pp, Coutp)

    s2 = p["bn2_gamma"] * lax.rsqrt(p["bn2_var"] + eps)
    w2 = jnp.transpose(p["conv2_w"], (2, 3, 1, 0)).reshape(9, planes, planes)
    w2 = jnp.pad(w2 * s2[None, None, :],
                 ((0, 0), (0, Pp - planes), (0, Pp - planes)))
    b2 = p["conv2_b"] * s2 + p["bn2_beta"] - p["bn2_mean"] * s2
    b2 = _pad2d(b2.reshape(1, planes), 1, Pp)

    full2 = lambda n: (0, 0)
    full3 = lambda n: (0, 0, 0)
    in_specs = [
        pl.BlockSpec((1, Rin, Cinp), lambda n: (n, 0, 0)),   # x raster (per image)
        pl.BlockSpec((Rin, 1), full2),                       # validity mask
        pl.BlockSpec((Cinp, Pp), full2),                     # W1 (BN folded)
        pl.BlockSpec((1, Pp), full2),                        # shift1
        pl.BlockSpec((9, Pp, Pp), full3),                    # W2 taps (BN folded)
        pl.BlockSpec((1, Pp), full2),                        # shift2
        pl.BlockSpec((Pp, Coutp), full2),                    # W3 (BN folded)
        pl.BlockSpec((1, Coutp), full2),                     # shift3
    ]
    args = [xs_raster, mask, w1, b1, w2, b2, w3, b3]
    flops = 2 * N * (Rin * Cinp * Pp + 9 * Rout * Pp * Pp + Rout * Pp * Coutp)

    if has_ds:
        ds_b = p["ds_b"] if p.get("ds_b") is not None else jnp.zeros((cout,), x_nchw.dtype)
        wd, bd = fold_1x1(p["ds_w"], ds_b, p["ds_bn_gamma"], p["ds_bn_beta"],
                          p["ds_bn_mean"], p["ds_bn_var"], Cin, cout, Cinp, Coutp)
        in_specs += [pl.BlockSpec((Cinp, Coutp), full2),
                     pl.BlockSpec((1, Coutp), full2)]
        args += [wd, bd]
        flops += 2 * N * Rout * Cinp * Coutp
        kernel = functools.partial(_bottleneck_kernel_ds, wpad=Wpad, rout=Rout)
    else:
        kernel = functools.partial(_bottleneck_kernel_id, wpad=Wpad, rout=Rout)

    bytes_accessed = 4 * (sum(int(a.size) for a in args) + N * Rout * Coutp)

    out = pl.pallas_call(
        kernel,
        out_shape=jax.ShapeDtypeStruct((N, Rout, Coutp), x_nchw.dtype),
        grid_spec=pltpu.PrefetchScalarGridSpec(
            num_scalar_prefetch=0,
            grid=(N,),
            in_specs=in_specs,
            out_specs=pl.BlockSpec((1, Rout, Coutp), lambda n: (n, 0, 0)),
            scratch_shapes=[pltpu.VMEM((Rin, Pp), jnp.float32)],
        ),
        compiler_params=pltpu.CompilerParams(
            dimension_semantics=("parallel",),
            vmem_limit_bytes=_vmem_budget(),
        ),
        cost_estimate=pl.CostEstimate(flops=flops, transcendentals=0,
                                      bytes_accessed=bytes_accessed),
    )(*args)

    # Drop raster / channel padding and return to NCHW.
    out = out.reshape(N, Hs, Wpad, Coutp)[:, :, :Ws, :cout]
    return jnp.transpose(out, (0, 3, 1, 2))


# --------------------------------------------------------------------------
# Pure-JAX reference (XLA convolutions) for correctness checking
# --------------------------------------------------------------------------

def bottleneck_ref(x, p, stride=1, eps=1e-5):
    def conv(x, w, b, stride=1, pad=0):
        y = lax.conv_general_dilated(
            x, w, window_strides=(stride, stride),
            padding=[(pad, pad), (pad, pad)],
            dimension_numbers=("NCHW", "OIHW", "NCHW"))
        return y + b[None, :, None, None]

    def bn(x, g, b, m, v):
        s = g / jnp.sqrt(v + eps)
        return x * s[None, :, None, None] + (b - m * s)[None, :, None, None]

    out = jax.nn.relu(bn(conv(x, p["conv1_w"], p["conv1_b"], stride=stride),
                         p["bn1_gamma"], p["bn1_beta"], p["bn1_mean"], p["bn1_var"]))
    out = jax.nn.relu(bn(conv(out, p["conv2_w"], p["conv2_b"], pad=1),
                         p["bn2_gamma"], p["bn2_beta"], p["bn2_mean"], p["bn2_var"]))
    out = bn(conv(out, p["conv3_w"], p["conv3_b"]),
             p["bn3_gamma"], p["bn3_beta"], p["bn3_mean"], p["bn3_var"])
    if p.get("ds_w") is not None:
        residual = bn(conv(x, p["ds_w"], p["ds_b"], stride=stride),
                      p["ds_bn_gamma"], p["ds_bn_beta"],
                      p["ds_bn_mean"], p["ds_bn_var"])
    else:
        residual = x
    return jax.nn.relu(out + residual)


# --------------------------------------------------------------------------

def _make_params(key, inplanes, planes, with_ds):
    cout = planes * 4
    ks = jax.random.split(key, 24)

    def nrm(k, shape, s=0.2):
        return s * jax.random.normal(k, shape, dtype=jnp.float32)

    def bn(k0, k1, k2, k3, c):
        return (1.0 + nrm(k0, (c,), 0.1), nrm(k1, (c,)), nrm(k2, (c,)),
                1.0 + 0.2 * jax.random.uniform(k3, (c,), dtype=jnp.float32))

    p = {}
    p["conv1_w"] = nrm(ks[0], (planes, inplanes, 1, 1))
    p["conv1_b"] = nrm(ks[1], (planes,))
    p["bn1_gamma"], p["bn1_beta"], p["bn1_mean"], p["bn1_var"] = bn(ks[2], ks[3], ks[4], ks[5], planes)

    p["conv2_w"] = nrm(ks[6], (planes, planes, 3, 3))
    p["conv2_b"] = nrm(ks[7], (planes,))
    p["bn2_gamma"], p["bn2_beta"], p["bn2_mean"], p["bn2_var"] = bn(ks[8], ks[9], ks[10], ks[11], planes)

    p["conv3_w"] = nrm(ks[12], (cout, planes, 1, 1))
    p["conv3_b"] = nrm(ks[13], (cout,))
    p["bn3_gamma"], p["bn3_beta"], p["bn3_mean"], p["bn3_var"] = bn(ks[14], ks[15], ks[16], ks[17], cout)

    if with_ds:
        p["ds_w"] = nrm(ks[18], (cout, inplanes, 1, 1))
        p["ds_b"] = nrm(ks[19], (cout,))
        p["ds_bn_gamma"], p["ds_bn_beta"], p["ds_bn_mean"], p["ds_bn_var"] = bn(ks[20], ks[21], ks[22], ks[23], cout)
    return p


if __name__ == "__main__":
    key = jax.random.PRNGKey(0)
    k1, k2, kx1, kx2 = jax.random.split(key, 4)

    # Case 1: stride=1, identity residual (inplanes == planes*4).
    N, inplanes, H, W, planes = 2, 16, 8, 8, 4
    p1 = _make_params(k1, inplanes, planes, with_ds=False)
    x1 = jax.random.normal(kx1, (N, inplanes, H, W), dtype=jnp.float32)
    out1 = jax.block_until_ready(bottleneck_forward(x1, p1, stride=1))
    ref1 = bottleneck_ref(x1, p1, stride=1)
    assert out1.shape == ref1.shape and out1.dtype == ref1.dtype
    err1 = float(jnp.max(jnp.abs(out1 - ref1)))
    assert jnp.allclose(out1, ref1, atol=2e-3, rtol=2e-3), f"case1 max abs err {err1}"

    # Case 2: stride=2 with a conv1x1+BN downsample residual.
    N, inplanes, H, W, planes = 2, 16, 8, 8, 8
    p2 = _make_params(k2, inplanes, planes, with_ds=True)
    x2 = jax.random.normal(kx2, (N, inplanes, H, W), dtype=jnp.float32)
    out2 = jax.block_until_ready(bottleneck_forward(x2, p2, stride=2))
    ref2 = bottleneck_ref(x2, p2, stride=2)
    assert out2.shape == ref2.shape and out2.dtype == ref2.dtype
    err2 = float(jnp.max(jnp.abs(out2 - ref2)))
    assert jnp.allclose(out2, ref2, atol=2e-3, rtol=2e-3), f"case2 max abs err {err2}"

    print("KERNEL_OK")
</pallas_src>

<mosaic_0001>
module attributes {stable_mosaic.version = 11 : i64} {
  func.func @_bottleneck_kernel_id(%arg0: i32, %arg1: memref<1x192x128xf32, #tpu.memory_space<vmem>>, %arg2: memref<192x1xf32, #tpu.memory_space<vmem>>, %arg3: memref<128x128xf32, #tpu.memory_space<vmem>>, %arg4: memref<1x128xf32, #tpu.memory_space<vmem>>, %arg5: memref<9x128x128xf32, #tpu.memory_space<vmem>>, %arg6: memref<1x128xf32, #tpu.memory_space<vmem>>, %arg7: memref<128x128xf32, #tpu.memory_space<vmem>>, %arg8: memref<1x128xf32, #tpu.memory_space<vmem>>, %arg9: memref<1x128x128xf32, #tpu.memory_space<vmem>>, %arg10: memref<192x128xf32, #tpu.memory_space<vmem>>) attributes {dimension_semantics = [#tpu.dimension_semantics<parallel>], iteration_bounds = array<i64: 2>, scalar_prefetch = 0 : i64, scratch_operands = 1 : i64, tpu.core_type = #tpu.core_type<tc>, window_params = [{transform_indices = @transform_0, window_bounds = array<i64: 1, 192, 128>}, {pipeline_mode = #tpu.pipeline_mode<synchronous>, transform_indices = @transform_1, window_bounds = array<i64: 192, 1>}, {pipeline_mode = #tpu.pipeline_mode<synchronous>, transform_indices = @transform_2, window_bounds = array<i64: 128, 128>}, {pipeline_mode = #tpu.pipeline_mode<synchronous>, transform_indices = @transform_3, window_bounds = array<i64: 1, 128>}, {pipeline_mode = #tpu.pipeline_mode<synchronous>, transform_indices = @transform_4, window_bounds = array<i64: 9, 128, 128>}, {pipeline_mode = #tpu.pipeline_mode<synchronous>, transform_indices = @transform_5, window_bounds = array<i64: 1, 128>}, {pipeline_mode = #tpu.pipeline_mode<synchronous>, transform_indices = @transform_6, window_bounds = array<i64: 128, 128>}, {pipeline_mode = #tpu.pipeline_mode<synchronous>, transform_indices = @transform_7, window_bounds = array<i64: 1, 128>}, {transform_indices = @transform_8, window_bounds = array<i64: 1, 128, 128>}]} {
    %c0 = arith.constant 0 : index
    %c0_0 = arith.constant 0 : index
    %c0_1 = arith.constant 0 : index
    %0 = vector.load %arg1[%c0, %c0_0, %c0_1] : memref<1x192x128xf32, #tpu.memory_space<vmem>>, vector<1x192x128xf32>
    %1 = vector.shape_cast %0 : vector<1x192x128xf32> to vector<192x128xf32>
    %c0_2 = arith.constant 0 : index
    %c0_3 = arith.constant 0 : index
    %2 = vector.load %arg3[%c0_2, %c0_3] : memref<128x128xf32, #tpu.memory_space<vmem>>, vector<128x128xf32>
    %cst = arith.constant dense<0.000000e+00> : vector<192x128xf32>
    %3 = tpu.matmul %1, %2, %cst {dimension_numbers = #tpu.dot_dimension_numbers<[1], [0], [0], [1], [0, 0, 1, 1], [], []>} : vector<192x128xf32>, vector<128x128xf32>, vector<192x128xf32> -> vector<192x128xf32>
    %c0_4 = arith.constant 0 : index
    %c0_5 = arith.constant 0 : index
    %4 = vector.load %arg4[%c0_4, %c0_5] : memref<1x128xf32, #tpu.memory_space<vmem>>, vector<1x128xf32>
    %5 = vector.broadcast %4 : vector<1x128xf32> to vector<192x128xf32>
    %6 = arith.addf %3, %5 : vector<192x128xf32>
    %cst_6 = arith.constant 0.000000e+00 : f32
    %7 = vector.broadcast %cst_6 : f32 to vector<192x128xf32>
    %8 = arith.maximumf %6, %7 : vector<192x128xf32>
    %c0_7 = arith.constant 0 : index
    %c0_8 = arith.constant 0 : index
    %9 = vector.load %arg2[%c0_7, %c0_8] : memref<192x1xf32, #tpu.memory_space<vmem>>, vector<192x1xf32>
    %10 = vector.broadcast %9 : vector<192x1xf32> to vector<192x128xf32>
    %11 = arith.mulf %8, %10 : vector<192x128xf32>
    %c0_9 = arith.constant 0 : index
    %c0_10 = arith.constant 0 : index
    %12 = vector.load %arg10[%c0_9, %c0_10] : memref<192x128xf32, #tpu.memory_space<vmem>>, vector<192x128xf32>
    tpu.vector_store %arg10[%c0_9, %c0_10], %11 {strides = array<i32>} : memref<192x128xf32, #tpu.memory_space<vmem>>, vector<192x128xf32>,
    %c15 = arith.constant 15 : index
    %c0_11 = arith.constant 0 : index
    %13 = vector.load %arg10[%c15, %c0_11] : memref<192x128xf32, #tpu.memory_space<vmem>>, vector<128x128xf32>
    %c0_12 = arith.constant 0 : index
    %c0_13 = arith.constant 0 : index
    %c0_14 = arith.constant 0 : index
    %14 = vector.load %arg5[%c0_12, %c0_13, %c0_14] : memref<9x128x128xf32, #tpu.memory_space<vmem>>, vector<1x128x128xf32>
    %15 = vector.shape_cast %14 : vector<1x128x128xf32> to vector<128x128xf32>
    %cst_15 = arith.constant dense<0.000000e+00> : vector<128x128xf32>
    %16 = tpu.matmul %13, %15, %cst_15 {dimension_numbers = #tpu.dot_dimension_numbers<[1], [0], [0], [1], [0, 0, 1, 1], [], []>} : vector<128x128xf32>, vector<128x128xf32>, vector<128x128xf32> -> vector<128x128xf32>
    %c16 = arith.constant 16 : index
    %c0_16 = arith.constant 0 : index
    %17 = vector.load %arg10[%c16, %c0_16] : memref<192x128xf32, #tpu.memory_space<vmem>>, vector<128x128xf32>
    %c1 = arith.constant 1 : index
    %c0_17 = arith.constant 0 : index
    %c0_18 = arith.constant 0 : index
    %18 = vector.load %arg5[%c1, %c0_17, %c0_18] : memref<9x128x128xf32, #tpu.memory_space<vmem>>, vector<1x128x128xf32>
    %19 = vector.shape_cast %18 : vector<1x128x128xf32> to vector<128x128xf32>
    %cst_19 = arith.constant dense<0.000000e+00> : vector<128x128xf32>
    %20 = tpu.matmul %17, %19, %cst_19 {dimension_numbers = #tpu.dot_dimension_numbers<[1], [0], [0], [1], [0, 0, 1, 1], [], []>} : vector<128x128xf32>, vector<128x128xf32>, vector<128x128xf32> -> vector<128x128xf32>
    %21 = arith.addf %16, %20 : vector<128x128xf32>
    %c17 = arith.constant 17 : index
    %c0_20 = arith.constant 0 : index
    %22 = vector.load %arg10[%c17, %c0_20] : memref<192x128xf32, #tpu.memory_space<vmem>>, vector<128x128xf32>
    %c2 = arith.constant 2 : index
    %c0_21 = arith.constant 0 : index
    %c0_22 = arith.constant 0 : index
    %23 = vector.load %arg5[%c2, %c0_21, %c0_22] : memref<9x128x128xf32, #tpu.memory_space<vmem>>, vector<1x128x128xf32>
    %24 = vector.shape_cast %23 : vector<1x128x128xf32> to vector<128x128xf32>
    %cst_23 = arith.constant dense<0.000000e+00> : vector<128x128xf32>
    %25 = tpu.matmul %22, %24, %cst_23 {dimension_numbers = #tpu.dot_dimension_numbers<[1], [0], [0], [1], [0, 0, 1, 1], [], []>} : vector<128x128xf32>, vector<128x128xf32>, vector<128x128xf32> -> vector<128x128xf32>
    %26 = arith.addf %21, %25 : vector<128x128xf32>
    %c31 = arith.constant 31 : index
    %c0_24 = arith.constant 0 : index
    %27 = vector.load %arg10[%c31, %c0_24] : memref<192x128xf32, #tpu.memory_space<vmem>>, vector<128x128xf32>
    %c3 = arith.constant 3 : index
    %c0_25 = arith.constant 0 : index
    %c0_26 = arith.constant 0 : index
    %28 = vector.load %arg5[%c3, %c0_25, %c0_26] : memref<9x128x128xf32, #tpu.memory_space<vmem>>, vector<1x128x128xf32>
    %29 = vector.shape_cast %28 : vector<1x128x128xf32> to vector<128x128xf32>
    %cst_27 = arith.constant dense<0.000000e+00> : vector<128x128xf32>
    %30 = tpu.matmul %27, %29, %cst_27 {dimension_numbers = #tpu.dot_dimension_numbers<[1], [0], [0], [1], [0, 0, 1, 1], [], []>} : vector<128x128xf32>, vector<128x128xf32>, vector<128x128xf32> -> vector<128x128xf32>
    %31 = arith.addf %26, %30 : vector<128x128xf32>
    %c32 = arith.constant 32 : index
    %c0_28 = arith.constant 0 : index
    %32 = vector.load %arg10[%c32, %c0_28] : memref<192x128xf32, #tpu.memory_space<vmem>>, vector<128x128xf32>
    %c4 = arith.constant 4 : index
    %c0_29 = arith.constant 0 : index
    %c0_30 = arith.constant 0 : index
    %33 = vector.load %arg5[%c4, %c0_29, %c0_30] : memref<9x128x128xf32, #tpu.memory_space<vmem>>, vector<1x128x128xf32>
    %34 = vector.shape_cast %33 : vector<1x128x128xf32> to vector<128x128xf32>
    %cst_31 = arith.constant dense<0.000000e+00> : vector<128x128xf32>
    %35 = tpu.matmul %32, %34, %cst_31 {dimension_numbers = #tpu.dot_dimension_numbers<[1], [0], [0], [1], [0, 0, 1, 1], [], []>} : vector<128x128xf32>, vector<128x128xf32>, vector<128x128xf32> -> vector<128x128xf32>
    %36 = arith.addf %31, %35 : vector<128x128xf32>
    %c33 = arith.constant 33 : index
    %c0_32 = arith.constant 0 : index
    %37 = vector.load %arg10[%c33, %c0_32] : memref<192x128xf32, #tpu.memory_space<vmem>>, vector<128x128xf32>
    %c5 = arith.constant 5 : index
    %c0_33 = arith.constant 0 : index
    %c0_34 = arith.constant 0 : index
    %38 = vector.load %arg5[%c5, %c0_33, %c0_34] : memref<9x128x128xf32, #tpu.memory_space<vmem>>, vector<1x128x128xf32>
    %39 = vector.shape_cast %38 : vector<1x128x128xf32> to vector<128x128xf32>
    %cst_35 = arith.constant dense<0.000000e+00> : vector<128x128xf32>
    %40 = tpu.matmul %37, %39, %cst_35 {dimension_numbers = #tpu.dot_dimension_numbers<[1], [0], [0], [1], [0, 0, 1, 1], [], []>} : vector<128x128xf32>, vector<128x128xf32>, vector<128x128xf32> -> vector<128x128xf32>
    %41 = arith.addf %36, %40 : vector<128x128xf32>
    %c47 = arith.constant 47 : index
    %c0_36 = arith.constant 0 : index
    %42 = vector.load %arg10[%c47, %c0_36] : memref<192x128xf32, #tpu.memory_space<vmem>>, vector<128x128xf32>
    %c6 = arith.constant 6 : index
    %c0_37 = arith.constant 0 : index
    %c0_38 = arith.constant 0 : index
    %43 = vector.load %arg5[%c6, %c0_37, %c0_38] : memref<9x128x128xf32, #tpu.memory_space<vmem>>, vector<1x128x128xf32>
    %44 = vector.shape_cast %43 : vector<1x128x128xf32> to vector<128x128xf32>
    %cst_39 = arith.constant dense<0.000000e+00> : vector<128x128xf32>
    %45 = tpu.matmul %42, %44, %cst_39 {dimension_numbers = #tpu.dot_dimension_numbers<[1], [0], [0], [1], [0, 0, 1, 1], [], []>} : vector<128x128xf32>, vector<128x128xf32>, vector<128x128xf32> -> vector<128x128xf32>
    %46 = arith.addf %41, %45 : vector<128x128xf32>
    %c48 = arith.constant 48 : index
    %c0_40 = arith.constant 0 : index
    %47 = vector.load %arg10[%c48, %c0_40] : memref<192x128xf32, #tpu.memory_space<vmem>>, vector<128x128xf32>
    %c7 = arith.constant 7 : index
    %c0_41 = arith.constant 0 : index
    %c0_42 = arith.constant 0 : index
    %48 = vector.load %arg5[%c7, %c0_41, %c0_42] : memref<9x128x128xf32, #tpu.memory_space<vmem>>, vector<1x128x128xf32>
    %49 = vector.shape_cast %48 : vector<1x128x128xf32> to vector<128x128xf32>
    %cst_43 = arith.constant dense<0.000000e+00> : vector<128x128xf32>
    %50 = tpu.matmul %47, %49, %cst_43 {dimension_numbers = #tpu.dot_dimension_numbers<[1], [0], [0], [1], [0, 0, 1, 1], [], []>} : vector<128x128xf32>, vector<128x128xf32>, vector<128x128xf32> -> vector<128x128xf32>
    %51 = arith.addf %46, %50 : vector<128x128xf32>
    %c49 = arith.constant 49 : index
    %c0_44 = arith.constant 0 : index
    %52 = vector.load %arg10[%c49, %c0_44] : memref<192x128xf32, #tpu.memory_space<vmem>>, vector<128x128xf32>
    %c8 = arith.constant 8 : index
    %c0_45 = arith.constant 0 : index
    %c0_46 = arith.constant 0 : index
    %53 = vector.load %arg5[%c8, %c0_45, %c0_46] : memref<9x128x128xf32, #tpu.memory_space<vmem>>, vector<1x128x128xf32>
    %54 = vector.shape_cast %53 : vector<1x128x128xf32> to vector<128x128xf32>
    %cst_47 = arith.constant dense<0.000000e+00> : vector<128x128xf32>
    %55 = tpu.matmul %52, %54, %cst_47 {dimension_numbers = #tpu.dot_dimension_numbers<[1], [0], [0], [1], [0, 0, 1, 1], [], []>} : vector<128x128xf32>, vector<128x128xf32>, vector<128x128xf32> -> vector<128x128xf32>
    %56 = arith.addf %51, %55 : vector<128x128xf32>
    %c0_48 = arith.constant 0 : index
    %c0_49 = arith.constant 0 : index
    %57 = vector.load %arg6[%c0_48, %c0_49] : memref<1x128xf32, #tpu.memory_space<vmem>>, vector<1x128xf32>
    %58 = vector.broadcast %57 : vector<1x128xf32> to vector<128x128xf32>
    %59 = arith.addf %56, %58 : vector<128x128xf32>
    %cst_50 = arith.constant 0.000000e+00 : f32
    %60 = vector.broadcast %cst_50 : f32 to vector<128x128xf32>
    %61 = arith.maximumf %59, %60 : vector<128x128xf32>
    %c0_51 = arith.constant 0 : index
    %c0_52 = arith.constant 0 : index
    %62 = vector.load %arg7[%c0_51, %c0_52] : memref<128x128xf32, #tpu.memory_space<vmem>>, vector<128x128xf32>
    %cst_53 = arith.constant dense<0.000000e+00> : vector<128x128xf32>
    %63 = tpu.matmul %61, %62, %cst_53 {dimension_numbers = #tpu.dot_dimension_numbers<[1], [0], [0], [1], [0, 0, 1, 1], [], []>} : vector<128x128xf32>, vector<128x128xf32>, vector<128x128xf32> -> vector<128x128xf32>
    %c0_54 = arith.constant 0 : index
    %c0_55 = arith.constant 0 : index
    %64 = vector.load %arg8[%c0_54, %c0_55] : memref<1x128xf32, #tpu.memory_space<vmem>>, vector<1x128xf32>
    %65 = vector.broadcast %64 : vector<1x128xf32> to vector<128x128xf32>
    %66 = arith.addf %63, %65 : vector<128x128xf32>
    %c0_56 = arith.constant 0 : index
    %c32_57 = arith.constant 32 : index
    %c0_58 = arith.constant 0 : index
    %67 = vector.load %arg1[%c0_56, %c32_57, %c0_58] : memref<1x192x128xf32, #tpu.memory_space<vmem>>, vector<1x128x128xf32>
    %68 = vector.shape_cast %67 : vector<1x128x128xf32> to vector<128x128xf32>
    %69 = arith.addf %66, %68 : vector<128x128xf32>
    %cst_59 = arith.constant 0.000000e+00 : f32
    %70 = vector.broadcast %cst_59 : f32 to vector<128x128xf32>
    %71 = arith.maximumf %69, %70 : vector<128x128xf32>
    %c0_60 = arith.constant 0 : index
    %c0_61 = arith.constant 0 : index
    %c0_62 = arith.constant 0 : index
    %72 = vector.load %arg9[%c0_60, %c0_61, %c0_62] : memref<1x128x128xf32, #tpu.memory_space<vmem>>, vector<1x128x128xf32>
    %73 = vector.shape_cast %72 : vector<1x128x128xf32> to vector<128x128xf32>
    %74 = vector.shape_cast %71 : vector<128x128xf32> to vector<1x128x128xf32>
    tpu.vector_store %arg9[%c0_60, %c0_61, %c0_62], %74 {strides = array<i32>} : memref<1x128x128xf32, #tpu.memory_space<vmem>>, vector<1x128x128xf32>,
    return
  }
  func.func @transform_0(%arg0: i32) -> (i32, i32, i32) {
    %c0_i32 = arith.constant 0 : i32
    %c0_i32_0 = arith.constant 0 : i32
    %c0_i32_1 = arith.constant 0 : i32
    return %arg0, %c0_i32, %c0_i32_0 : i32, i32, i32
  }
  func.func @transform_1(%arg0: i32) -> (i32, i32) {
    %c0_i32 = arith.constant 0 : i32
    %c0_i32_0 = arith.constant 0 : i32
    %c0_i32_1 = arith.constant 0 : i32
    return %c0_i32, %c0_i32_0 : i32, i32
  }
  func.func @transform_2(%arg0: i32) -> (i32, i32) {
    %c0_i32 = arith.constant 0 : i32
    %c0_i32_0 = arith.constant 0 : i32
    %c0_i32_1 = arith.constant 0 : i32
    return %c0_i32, %c0_i32_0 : i32, i32
  }
  func.func @transform_3(%arg0: i32) -> (i32, i32) {
    %c0_i32 = arith.constant 0 : i32
    %c0_i32_0 = arith.constant 0 : i32
    %c0_i32_1 = arith.constant 0 : i32
    return %c0_i32, %c0_i32_0 : i32, i32
  }
  func.func @transform_4(%arg0: i32) -> (i32, i32, i32) {
    %c0_i32 = arith.constant 0 : i32
    %c0_i32_0 = arith.constant 0 : i32
    %c0_i32_1 = arith.constant 0 : i32
    %c0_i32_2 = arith.constant 0 : i32
    return %c0_i32, %c0_i32_0, %c0_i32_1 : i32, i32, i32
  }
  func.func @transform_5(%arg0: i32) -> (i32, i32) {
    %c0_i32 = arith.constant 0 : i32
    %c0_i32_0 = arith.constant 0 : i32
    %c0_i32_1 = arith.constant 0 : i32
    return %c0_i32, %c0_i32_0 : i32, i32
  }
  func.func @transform_6(%arg0: i32) -> (i32, i32) {
    %c0_i32 = arith.constant 0 : i32
    %c0_i32_0 = arith.constant 0 : i32
    %c0_i32_1 = arith.constant 0 : i32
    return %c0_i32, %c0_i32_0 : i32, i32
  }
  func.func @transform_7(%arg0: i32) -> (i32, i32) {
    %c0_i32 = arith.constant 0 : i32
    %c0_i32_0 = arith.constant 0 : i32
    %c0_i32_1 = arith.constant 0 : i32
    return %c0_i32, %c0_i32_0 : i32, i32
  }
  func.func @transform_8(%arg0: i32) -> (i32, i32, i32) {
    %c0_i32 = arith.constant 0 : i32
    %c0_i32_0 = arith.constant 0 : i32
    %c0_i32_1 = arith.constant 0 : i32
    return %arg0, %c0_i32, %c0_i32_0 : i32, i32, i32
  }
}

</mosaic_0001>

<llo_original>
// kernel: tpu_custom_call.1
$region0: #{tpu_custom_call.1}
  #allocation0 [shape = 'u32[]', space=smem, size = 0x4, offset = 0x4, fixed_abs, tag = 'smem constant byte address 0x4 - core index']
  #allocation1 [shape = 'u32[72,128]{1,0:T(1,128)}', space=vmem, size = 0x9000, scoped, tag = 'internal scratch']
  #allocation2 [shape = 'f32[192,128]{1,0:T(8,128)}', space=vmem, size = 0x18000, scoped, tag = 'scratch operand']
  %s0 = inlined_call_operand.hbm [shape: f32[2,192,128], index: 0, kind: input, shape index: {}]
  %s1 = inlined_call_operand.vmem [shape: f32[192,1], index: 1, kind: input, shape index: {}]
  %s2 = inlined_call_operand.vmem [shape: f32[128,128], index: 2, kind: input, shape index: {}]
  %s3 = inlined_call_operand.vmem [shape: f32[1,128], index: 3, kind: input, shape index: {}]
  %s4 = inlined_call_operand.hbm [shape: f32[9,128,128], index: 4, kind: input, shape index: {}]
  %s5 = inlined_call_operand.vmem [shape: f32[1,128], index: 5, kind: input, shape index: {}]
  %s6 = inlined_call_operand.hbm [shape: f32[128,128], index: 6, kind: input, shape index: {}]
  %s7 = inlined_call_operand.vmem [shape: f32[1,128], index: 7, kind: input, shape index: {}]
  %s8 = inlined_call_operand.hbm [shape: f32[2,128,128], index: 8, kind: output, shape index: {}]
  %s9 = sld [smem:[#allocation0]]
  $region77: #{tpu_custom_call.1} parent=0
    _
  %s11 = ssub.s32 1, %s9
  %s12 = scalar_select 0, %s11, %s9
  $region1: #{tpu_custom_call.1} parent=0
    #allocation3 [shape = 'u8[196608]{0}', space=vmem, size = 0x30000, scoped, tag = 'input window, operand 0']
    #allocation4 [shape = 's32[2]{0}', space=sflag, size = 0x8, scoped, tag = 'scoped memory for tpu_custom_call.1']
    #allocation5 [shape = 's32[2]{0}', space=sflag, size = 0x8, scoped, tag = 'scoped memory for tpu_custom_call.1']
    #allocation6 [shape = 'u8[589824]{0}', space=vmem, size = 0x90000, scoped, tag = 'input window, operand 4, single buffered']
    #allocation7 [shape = 's32[1]{0}', space=sflag, size = 0x4, scoped, tag = 'scoped memory for tpu_custom_call.1']
    #allocation8 [shape = 'u8[65536]{0}', space=vmem, size = 0x10000, scoped, tag = 'input window, operand 6, single buffered']
    #allocation9 [shape = 'u8[131072]{0}', space=vmem, size = 0x20000, scoped, tag = 'output window, operand 0']
    %13 = vsyncpa [#allocation4], 0
    %s14 = scalar_lea.sflag [#allocation4], 1
    %15 = vsyncpa %s14, 0
    %16 = vsyncpa [#allocation7], 0
    %17 = vsyncpa [#allocation5], 0
    %s18 = scalar_lea.sflag [#allocation5], 1
    %19 = vsyncpa %s18, 0
    loop: start=0, step=1, limit=4
    $region2: #{tpu_custom_call.1} parent=1 // loop_pre_header
      _
    $region3: #{tpu_custom_call.1} parent=1 // loop_header
      %s21 = sphi 0, %s25
      %p22 = scmp.ge.s32.totalorder %s21, 4
      %s31 = sphi 0, %s33
      %s34 = sphi 0, %s31
      %s35 = sphi 0, %s34
      %s51 = sphi 0, %s35
      %s55 = sphi 0, %s55
      %s57 = sphi 0, %s55
      %s58 = sphi 0, %s57
      %s72 = sphi 0, %s58
      %s76 = sphi 0, %s76
      %s78 = sphi 0, %s76
      %s79 = sphi 0, %s78
      %s93 = sphi 0, %s79
      %s97 = sphi 0, %s97
      %s99 = sphi 0, %s97
      %s100 = sphi 0, %s99
      %s114 = sphi 0, %s100
      %s118 = sphi 0, %s118
      %s120 = sphi 0, %s118
      %s121 = sphi 0, %s120
      %s135 = sphi 0, %s121
      %s139 = sphi 0, %s139
      %s141 = sphi 0, %s139
      %s142 = sphi 0, %s141
      %s156 = sphi 0, %s142
      %s160 = sphi 0, %s160
      %s162 = sphi 0, %s160
      %s163 = sphi 0, %s162
      %s177 = sphi 0, %s163
      %s181 = sphi 0, %s181
      %s183 = sphi 0, %s181
      %s184 = sphi 0, %s183
      %s198 = sphi 0, %s184
      %s204 = sphi 0, %s206
      %s207 = sphi 0, %s204
      %s208 = sphi 0, %s207
      %s224 = sphi 0, %s208
    $region4: #{tpu_custom_call.1} parent=1 // loop_header_branch
      %24 = sbr.rel (%p22) target = $region8
    $region5: #{tpu_custom_call.1} parent=1 // loop_body
      %s26 = ssub.s32 %s21, 1
      %s27 = ssub.s32 %s21, 2
      %s28 = sadd.s32 %s21, 1
      %s29 = ssub.s32 %s21, %s28
      %p30 = scmp.eq.s32.totalorder %s29, 0
      %s32 = sadd.s32 %s31, 1
      %s33 = scalar_select %p30, %s31, %s32
      %p36 = pneg %p30
      %p37 = scmp.eq.s32.totalorder %s21, 1
      %p38 = por %p36, %p37
      %p39 = scmp.ne.s32.totalorder %s31, %s34
      %p40 = scmp.eq.s32.totalorder %s21, 0
      %p41 = por %p39, %p40
      %p42 = scmp.ne.s32.totalorder %s31, %s34
      %p43 = scmp.eq.s32.totalorder %s26, 1
      %p44 = por %p42, %p43
      %p45 = scmp.ne.s32.totalorder %s34, %s35
      %p46 = scmp.eq.s32.totalorder %s26, 0
      %p47 = por %p45, %p46
      %p48 = scmp.ne.s32.totalorder %s34, %s35
      %p49 = scmp.eq.s32.totalorder %s27, 1
      %p50 = por %p48, %p49
      %p52 = scmp.ne.s32.totalorder %s35, %s51
      %p53 = scmp.eq.s32.totalorder %s27, 0
      %p54 = por %p52, %p53
      %s56 = sadd.s32 %s55, 1
      %p59 = scmp.eq.s32.totalorder %s21, 1
      %p60 = scmp.ne.s32.totalorder %s55, %s57
      %p61 = scmp.eq.s32.totalorder %s21, 0
      %p62 = por %p60, %p61
      %p63 = scmp.ne.s32.totalorder %s55, %s57
      %p64 = scmp.eq.s32.totalorder %s26, 1
      %p65 = por %p63, %p64
      %p66 = scmp.ne.s32.totalorder %s57, %s58
      %p67 = scmp.eq.s32.totalorder %s26, 0
      %p68 = por %p66, %p67
      %p69 = scmp.ne.s32.totalorder %s57, %s58
      %p70 = scmp.eq.s32.totalorder %s27, 1
      %p71 = por %p69, %p70
      %p73 = scmp.ne.s32.totalorder %s58, %s72
      %p74 = scmp.eq.s32.totalorder %s27, 0
      %p75 = por %p73, %p74
      %s77 = sadd.s32 %s76, 1
      %p80 = scmp.eq.s32.totalorder %s21, 1
      %p81 = scmp.ne.s32.totalorder %s76, %s78
      %p82 = scmp.eq.s32.totalorder %s21, 0
      %p83 = por %p81, %p82
      %p84 = scmp.ne.s32.totalorder %s76, %s78
      %p85 = scmp.eq.s32.totalorder %s26, 1
      %p86 = por %p84, %p85
      %p87 = scmp.ne.s32.totalorder %s78, %s79
      %p88 = scmp.eq.s32.totalorder %s26, 0
      %p89 = por %p87, %p88
      %p90 = scmp.ne.s32.totalorder %s78, %s79
      %p91 = scmp.eq.s32.totalorder %s27, 1
      %p92 = por %p90, %p91
      %p94 = scmp.ne.s32.totalorder %s79, %s93
      %p95 = scmp.eq.s32.totalorder %s27, 0
      %p96 = por %p94, %p95
      %s98 = sadd.s32 %s97, 1
      %p101 = scmp.eq.s32.totalorder %s21, 1
      %p102 = scmp.ne.s32.totalorder %s97, %s99
      %p103 = scmp.eq.s32.totalorder %s21, 0
      %p104 = por %p102, %p103
      %p105 = scmp.ne.s32.totalorder %s97, %s99
      %p106 = scmp.eq.s32.totalorder %s26, 1
      %p107 = por %p105, %p106
      %p108 = scmp.ne.s32.totalorder %s99, %s100
      %p109 = scmp.eq.s32.totalorder %s26, 0
      %p110 = por %p108, %p109
      %p111 = scmp.ne.s32.totalorder %s99, %s100
      %p112 = scmp.eq.s32.totalorder %s27, 1
      %p113 = por %p111, %p112
      %p115 = scmp.ne.s32.totalorder %s100, %s114
      %p116 = scmp.eq.s32.totalorder %s27, 0
      %p117 = por %p115, %p116
      %s119 = sadd.s32 %s118, 1
      %p122 = scmp.eq.s32.totalorder %s21, 1
      %p123 = scmp.ne.s32.totalorder %s118, %s120
      %p124 = scmp.eq.s32.totalorder %s21, 0
      %p125 = por %p123, %p124
      %p126 = scmp.ne.s32.totalorder %s118, %s120
      %p127 = scmp.eq.s32.totalorder %s26, 1
      %p128 = por %p126, %p127
      %p129 = scmp.ne.s32.totalorder %s120, %s121
      %p130 = scmp.eq.s32.totalorder %s26, 0
      %p131 = por %p129, %p130
      %p132 = scmp.ne.s32.totalorder %s120, %s121
      %p133 = scmp.eq.s32.totalorder %s27, 1
      %p134 = por %p132, %p133
      %p136 = scmp.ne.s32.totalorder %s121, %s135
      %p137 = scmp.eq.s32.totalorder %s27, 0
      %p138 = por %p136, %p137
      %s140 = sadd.s32 %s139, 1
      %p143 = scmp.eq.s32.totalorder %s21, 1
      %p144 = scmp.ne.s32.totalorder %s139, %s141
      %p145 = scmp.eq.s32.totalorder %s21, 0
      %p146 = por %p144, %p145
      %p147 = scmp.ne.s32.totalorder %s139, %s141
      %p148 = scmp.eq.s32.totalorder %s26, 1
      %p149 = por %p147, %p148
      %p150 = scmp.ne.s32.totalorder %s141, %s142
      %p151 = scmp.eq.s32.totalorder %s26, 0
      %p152 = por %p150, %p151
      %p153 = scmp.ne.s32.totalorder %s141, %s142
      %p154 = scmp.eq.s32.totalorder %s27, 1
      %p155 = por %p153, %p154
      %p157 = scmp.ne.s32.totalorder %s142, %s156
      %p158 = scmp.eq.s32.totalorder %s27, 0
      %p159 = por %p157, %p158
      %s161 = sadd.s32 %s160, 1
      %p164 = scmp.eq.s32.totalorder %s21, 1
      %p165 = scmp.ne.s32.totalorder %s160, %s162
      %p166 = scmp.eq.s32.totalorder %s21, 0
      %p167 = por %p165, %p166
      %p168 = scmp.ne.s32.totalorder %s160, %s162
      %p169 = scmp.eq.s32.totalorder %s26, 1
      %p170 = por %p168, %p169
      %p171 = scmp.ne.s32.totalorder %s162, %s163
      %p172 = scmp.eq.s32.totalorder %s26, 0
      %p173 = por %p171, %p172
      %p174 = scmp.ne.s32.totalorder %s162, %s163
      %p175 = scmp.eq.s32.totalorder %s27, 1
      %p176 = por %p174, %p175
      %p178 = scmp.ne.s32.totalorder %s163, %s177
      %p179 = scmp.eq.s32.totalorder %s27, 0
      %p180 = por %p178, %p179
      %s182 = sadd.s32 %s181, 1
      %p185 = scmp.eq.s32.totalorder %s21, 1
      %p186 = scmp.ne.s32.totalorder %s181, %s183
      %p187 = scmp.eq.s32.totalorder %s21, 0
      %p188 = por %p186, %p187
      %p189 = scmp.ne.s32.totalorder %s181, %s183
      %p190 = scmp.eq.s32.totalorder %s26, 1
      %p191 = por %p189, %p190
      %p192 = scmp.ne.s32.totalorder %s183, %s184
      %p193 = scmp.eq.s32.totalorder %s26, 0
      %p194 = por %p192, %p193
      %p195 = scmp.ne.s32.totalorder %s183, %s184
      %p196 = scmp.eq.s32.totalorder %s27, 1
      %p197 = por %p195, %p196
      %p199 = scmp.ne.s32.totalorder %s184, %s198
      %p200 = scmp.eq.s32.totalorder %s27, 0
      %p201 = por %p199, %p200
      %s202 = ssub.s32 %s21, %s28
      %p203 = scmp.eq.s32.totalorder %s202, 0
      %s205 = sadd.s32 %s204, 1
      %s206 = scalar_select %p203, %s204, %s205
      %p209 = pneg %p203
      %p210 = scmp.eq.s32.totalorder %s21, 1
      %p211 = por %p209, %p210
      %p212 = scmp.ne.s32.totalorder %s204, %s207
      %p213 = scmp.eq.s32.totalorder %s21, 0
      %p214 = por %p212, %p213
      %p215 = scmp.ne.s32.totalorder %s204, %s207
      %p216 = scmp.eq.s32.totalorder %s26, 1
      %p217 = por %p215, %p216
      %p218 = scmp.ne.s32.totalorder %s207, %s208
      %p219 = scmp.eq.s32.totalorder %s26, 0
      %p220 = por %p218, %p219
      %p221 = scmp.ne.s32.totalorder %s207, %s208
      %p222 = scmp.eq.s32.totalorder %s27, 1
      %p223 = por %p221, %p222
      %p225 = scmp.ne.s32.totalorder %s208, %s224
      %p226 = scmp.eq.s32.totalorder %s27, 0
      %p227 = por %p225, %p226
      %p228 = scmp.le.s32.totalorder 1, %s21
      %p229 = scmp.lt.s32.totalorder %s21, 3
      %p230 = pnand %p228, %p229
      %p231 = pneg %p230
      // Predicated region
      $region9: #{tpu_custom_call.1} parent=5 // pred_check
        _
      $region10: #{tpu_custom_call.1} parent=5 // pred_check_branch
        %233 = sbr.rel (%p230) target = $region12
      $region11: #{tpu_custom_call.1} parent=5 // pred_region
        %s234 = ssub.s32 %s21, 1
        // Predicated region
        $region13: #{tpu_custom_call.1} parent=11 // pred_check
          %p235 = pneg %p68
        $region14: #{tpu_custom_call.1} parent=11 // pred_check_branch
          %237 = sbr.rel (%p235) target = $region16
        $region15: #{tpu_custom_call.1} parent=11 // pred_region
          _
        $region16: #{tpu_custom_call.1} parent=11 // pred_fallthru
          _
        // Predicated region
        $region17: #{tpu_custom_call.1} parent=11 // pred_check
          %p238 = pneg %p89
        $region18: #{tpu_custom_call.1} parent=11 // pred_check_branch
          %240 = sbr.rel (%p238) target = $region20
        $region19: #{tpu_custom_call.1} parent=11 // pred_region
          _
        $region20: #{tpu_custom_call.1} parent=11 // pred_fallthru
          _
        // Predicated region
        $region21: #{tpu_custom_call.1} parent=11 // pred_check
          %p241 = pneg %p110
        $region22: #{tpu_custom_call.1} parent=11 // pred_check_branch
          %243 = sbr.rel (%p241) target = $region24
        $region23: #{tpu_custom_call.1} parent=11 // pred_region
          _
        $region24: #{tpu_custom_call.1} parent=11 // pred_fallthru
          _
        // Predicated region
        $region25: #{tpu_custom_call.1} parent=11 // pred_check
          %p244 = pneg %p131
        $region26: #{tpu_custom_call.1} parent=11 // pred_check_branch
          %246 = sbr.rel (%p244) target = $region28
        $region27: #{tpu_custom_call.1} parent=11 // pred_region
          %248 = vsyncadd [#allocation7], 0
          %s249 = sshll.u32 %s4, 4
          %s250 = int_to_ptr.hbm [resolvable:$true] %s249
          %s251 = sshll.u32 [#allocation6], 4
          %s252 = int_to_ptr.vmem [resolvable:$true] %s251
          %257 = dma.hbm_to_vmem [thread:$0]  %s250, 18432, %s252, [#allocation7], 128, 128, 8
        $region28: #{tpu_custom_call.1} parent=11 // pred_fallthru
          _
        // Predicated region
        $region29: #{tpu_custom_call.1} parent=11 // pred_check
          %p258 = pneg %p152
        $region30: #{tpu_custom_call.1} parent=11 // pred_check_branch
          %260 = sbr.rel (%p258) target = $region32
        $region31: #{tpu_custom_call.1} parent=11 // pred_region
          _
        $region32: #{tpu_custom_call.1} parent=11 // pred_fallthru
          _
        // Predicated region
        $region33: #{tpu_custom_call.1} parent=11 // pred_check
          %p261 = pneg %p173
        $region34: #{tpu_custom_call.1} parent=11 // pred_check_branch
          %263 = sbr.rel (%p261) target = $region36
        $region35: #{tpu_custom_call.1} parent=11 // pred_region
          %265 = vsyncadd [#allocation7], 0
          %s266 = sshll.u32 %s6, 4
          %s267 = int_to_ptr.hbm [resolvable:$true] %s266
          %s268 = sshll.u32 [#allocation8], 4
          %s269 = int_to_ptr.vmem [resolvable:$true] %s268
          %274 = dma.hbm_to_vmem [thread:$0]  %s267, 2048, %s269, [#allocation7], 128, 128, 8
        $region36: #{tpu_custom_call.1} parent=11 // pred_fallthru
          _
        // Predicated region
        $region37: #{tpu_custom_call.1} parent=11 // pred_check
          %p275 = pneg %p194
        $region38: #{tpu_custom_call.1} parent=11 // pred_check_branch
          %277 = sbr.rel (%p275) target = $region40
        $region39: #{tpu_custom_call.1} parent=11 // pred_region
          _
        $region40: #{tpu_custom_call.1} parent=11 // pred_fallthru
          _
      $region12: #{tpu_custom_call.1} parent=5 // pred_fallthru
        _
      %p278 = scmp.lt.s32.totalorder %s21, 2
      // Predicated region
      $region41: #{tpu_custom_call.1} parent=5 // pred_check
        %p279 = pneg %p278
      $region42: #{tpu_custom_call.1} parent=5 // pred_check_branch
        %281 = sbr.rel (%p279) target = $region44
      $region43: #{tpu_custom_call.1} parent=5 // pred_region
        // Predicated region
        $region45: #{tpu_custom_call.1} parent=43 // pred_check
          %p282 = pneg %p41
        $region46: #{tpu_custom_call.1} parent=43 // pred_check_branch
          %284 = sbr.rel (%p282) target = $region48
        $region47: #{tpu_custom_call.1} parent=43 // pred_region
          %s285 = sand.u32 %s31, 1
          %s286 = scalar_lea.sflag [#allocation4], %s285
          %s287 = sand.u32 %s31, 1
          %s288 = smul.addr %s287, 192
          %s289 = scalar_lea.vmem [#allocation3], %s288
          %291 = vsyncadd %s286, 0
          %s292 = smul.addr %s21, 24
          %s293 = smul.addr %s292, 8
          %s294 = scalar_lea.hbm %s0, %s293
          %s295 = sshll.u32 %s294, 4
          %s296 = int_to_ptr.hbm [resolvable:$true] %s295
          %s297 = sshll.u32 %s289, 4
          %s298 = int_to_ptr.vmem [resolvable:$true] %s297
          %303 = dma.hbm_to_vmem [thread:$0]  %s296, 3072, %s298, %s286, 128, 128, 8
        $region48: #{tpu_custom_call.1} parent=43 // pred_fallthru
          _
      $region44: #{tpu_custom_call.1} parent=5 // pred_fallthru
        _
      %p304 = scmp.le.s32.totalorder 1, %s21
      %p305 = scmp.lt.s32.totalorder %s21, 3
      %p306 = pnand %p304, %p305
      %p307 = pneg %p306
      // Predicated region
      $region49: #{tpu_custom_call.1} parent=5 // pred_check
        _
      $region50: #{tpu_custom_call.1} parent=5 // pred_check_branch
        %309 = sbr.rel (%p306) target = $region52
      $region51: #{tpu_custom_call.1} parent=5 // pred_region
        %s310 = ssub.s32 %s21, 1
        %s311 = sand.u32 %s34, 1
        %s312 = scalar_lea.sflag [#allocation4], %s311
        %s313 = sand.u32 %s34, 1
        %s314 = smul.addr %s313, 192
        %s315 = scalar_lea.vmem [#allocation3], %s314
        // Predicated region
        $region53: #{tpu_custom_call.1} parent=51 // pred_check
          %p316 = pneg %p47
        $region54: #{tpu_custom_call.1} parent=51 // pred_check_branch
          %318 = sbr.rel (%p316) target = $region56
        $region55: #{tpu_custom_call.1} parent=51 // pred_region
          %320 = dma.done %s312, 3072
        $region56: #{tpu_custom_call.1} parent=51 // pred_fallthru
          _
        // Predicated region
        $region57: #{tpu_custom_call.1} parent=51 // pred_check
          %p321 = pneg %p131
        $region58: #{tpu_custom_call.1} parent=51 // pred_check_branch
          %323 = sbr.rel (%p321) target = $region60
        $region59: #{tpu_custom_call.1} parent=51 // pred_region
          %325 = dma.done [#allocation7], 18432
        $region60: #{tpu_custom_call.1} parent=51 // pred_fallthru
          _
        // Predicated region
        $region61: #{tpu_custom_call.1} parent=51 // pred_check
          %p326 = pneg %p173
        $region62: #{tpu_custom_call.1} parent=51 // pred_check_branch
          %328 = sbr.rel (%p326) target = $region64
        $region63: #{tpu_custom_call.1} parent=51 // pred_region
          %330 = dma.done [#allocation7], 2048
        $region64: #{tpu_custom_call.1} parent=51 // pred_fallthru
          _
        %s331 = sand.u32 %s34, 1
        %s332 = scalar_lea.sflag [#allocation4], %s331
        %s333 = sand.u32 %s34, 1
        %s334 = smul.addr %s333, 192
        %s335 = scalar_lea.vmem [#allocation3], %s334
        %p336 = pneg %p47
        %p337 = pneg %p44
        %p338 = pneg %p68
        %p339 = pneg %p65
        %p340 = pneg %p89
        %p341 = pneg %p86
        %p342 = pneg %p110
        %p343 = pneg %p107
        %p344 = pneg %p131
        %p345 = pneg %p128
        %p346 = pneg %p152
        %p347 = pneg %p149
        %p348 = pneg %p173
        %p349 = pneg %p170
        %p350 = pneg %p194
        %p351 = pneg %p191
        %p352 = pneg %p220
        %p353 = pneg %p217
        %s354 = sand.u32 %s207, 1
        %s355 = scalar_lea.sflag [#allocation5], %s354
        %s356 = sand.u32 %s207, 1
        %s357 = smul.addr %s356, 128
        %s358 = scalar_lea.vmem [#allocation9], %s357
        %v359 = vld [vmem:[%s315] sm:$0xff]
        %v360 = vld [vmem:[%s315 + $0x8] sm:$0xff]
        %v361 = vld [vmem:[%s315 + $0x10] sm:$0xff]
        %v362 = vld [vmem:[%s315 + $0x18] sm:$0xff]
        %v363 = vld [vmem:[%s315 + $0x20] sm:$0xff]
        %v364 = vld [vmem:[%s315 + $0x28] sm:$0xff]
        %v365 = vld [vmem:[%s315 + $0x30] sm:$0xff]
        %v366 = vld [vmem:[%s315 + $0x38] sm:$0xff]
        %v367 = vld [vmem:[%s315 + $0x40] sm:$0xff]
        %v368 = vld [vmem:[%s315 + $0x48] sm:$0xff]
        %v369 = vld [vmem:[%s315 + $0x50] sm:$0xff]
        %v370 = vld [vmem:[%s315 + $0x58] sm:$0xff]
        %v371 = vld [vmem:[%s315 + $0x60] sm:$0xff]
        %v372 = vld [vmem:[%s315 + $0x68] sm:$0xff]
        %v373 = vld [vmem:[%s315 + $0x70] sm:$0xff]
        %v374 = vld [vmem:[%s315 + $0x78] sm:$0xff]
        %v375 = vld [vmem:[%s315 + $0x80] sm:$0xff]
        %v376 = vld [vmem:[%s315 + $0x88] sm:$0xff]
        %v377 = vld [vmem:[%s315 + $0x90] sm:$0xff]
        %v378 = vld [vmem:[%s315 + $0x98] sm:$0xff]
        %v379 = vld [vmem:[%s315 + $0xa0] sm:$0xff]
        %v380 = vld [vmem:[%s315 + $0xa8] sm:$0xff]
        %v381 = vld [vmem:[%s315 + $0xb0] sm:$0xff]
        %v382 = vld [vmem:[%s315 + $0xb8] sm:$0xff]
        %v383 = vld [vmem:[%s2] sm:$0xff]
        %v384 = vld [vmem:[%s2 + $0x8] sm:$0xff]
        %v385 = vld [vmem:[%s2 + $0x10] sm:$0xff]
        %v386 = vld [vmem:[%s2 + $0x18] sm:$0xff]
        %v387 = vld [vmem:[%s2 + $0x20] sm:$0xff]
        %v388 = vld [vmem:[%s2 + $0x28] sm:$0xff]
        %v389 = vld [vmem:[%s2 + $0x30] sm:$0xff]
        %v390 = vld [vmem:[%s2 + $0x38] sm:$0xff]
        %v391 = vld [vmem:[%s2 + $0x40] sm:$0xff]
        %v392 = vld [vmem:[%s2 + $0x48] sm:$0xff]
        %v393 = vld [vmem:[%s2 + $0x50] sm:$0xff]
        %v394 = vld [vmem:[%s2 + $0x58] sm:$0xff]
        %v395 = vld [vmem:[%s2 + $0x60] sm:$0xff]
        %v396 = vld [vmem:[%s2 + $0x68] sm:$0xff]
        %v397 = vld [vmem:[%s2 + $0x70] sm:$0xff]
        %v398 = vld [vmem:[%s2 + $0x78] sm:$0xff]
        %v399 = vld [vmem:[%s3] sm:$0x1]
        %v401 = vperm.slane %v399, 0
        %403 = vmatpush.msra.mxu0 %v398
        %404 = vmatpush.msra.mxu0 %v397
        %405 = vmatpush.msra.mxu0 %v396
        %406 = vmatpush.msra.mxu0 %v395
        %407 = vmatpush.msra.mxu0 %v394
        %408 = vmatpush.msra.mxu0 %v393
        %409 = vmatpush.msra.mxu0 %v392
        %410 = vmatpush.msra.mxu0 %v391
        %411 = vmatpush.msra.mxu0 %v390
        %412 = vmatpush.msra.mxu0 %v389
        %413 = vmatpush.msra.mxu0 %v388
        %414 = vmatpush.msra.mxu0 %v387
        %415 = vmatpush.msra.mxu0 %v386
        %416 = vmatpush.msra.mxu0 %v385
        %417 = vmatpush.msra.mxu0 %v384
        %418 = vmatpush.msra.mxu0 %v383
        %419 = vmatmul.f32.gmra.mxu0 %v359
        %v420 = vpop.f32.mrf.mxu0
        %v421 = vadd.f32 %v401, %v420
        %422 = vmatmul.f32.gmra.mxu0 %v360
        %v423 = vpop.f32.mrf.mxu0
        %v424 = vadd.f32 %v401, %v423
        %425 = vmatmul.f32.gmra.mxu0 %v361
        %v426 = vpop.f32.mrf.mxu0
        %v427 = vadd.f32 %v401, %v426
        %428 = vmatmul.f32.gmra.mxu0 %v362
        %v429 = vpop.f32.mrf.mxu0
        %v430 = vadd.f32 %v401, %v429
        %431 = vmatmul.f32.gmra.mxu0 %v363
        %v432 = vpop.f32.mrf.mxu0
        %v433 = vadd.f32 %v401, %v432
        %434 = vmatmul.f32.gmra.mxu0 %v364
        %v435 = vpop.f32.mrf.mxu0
        %v436 = vadd.f32 %v401, %v435
        %437 = vmatmul.f32.gmra.mxu0 %v365
        %v438 = vpop.f32.mrf.mxu0
        %v439 = vadd.f32 %v401, %v438
        %440 = vmatmul.f32.gmra.mxu0 %v366
        %v441 = vpop.f32.mrf.mxu0
        %v442 = vadd.f32 %v401, %v441
        %443 = vmatmul.f32.gmra.mxu0 %v367
        %v444 = vpop.f32.mrf.mxu0
        %v445 = vadd.f32 %v401, %v444
        %446 = vmatmul.f32.gmra.mxu0 %v368
        %v447 = vpop.f32.mrf.mxu0
        %v448 = vadd.f32 %v401, %v447
        %449 = vmatmul.f32.gmra.mxu0 %v369
        %v450 = vpop.f32.mrf.mxu0
        %v451 = vadd.f32 %v401, %v450
        %452 = vmatmul.f32.gmra.mxu0 %v370
        %v453 = vpop.f32.mrf.mxu0
        %v454 = vadd.f32 %v401, %v453
        %455 = vmatmul.f32.gmra.mxu0 %v371
        %v456 = vpop.f32.mrf.mxu0
        %v457 = vadd.f32 %v401, %v456
        %458 = vmatmul.f32.gmra.mxu0 %v372
        %v459 = vpop.f32.mrf.mxu0
        %v460 = vadd.f32 %v401, %v459
        %461 = vmatmul.f32.gmra.mxu0 %v373
        %v462 = vpop.f32.mrf.mxu0
        %v463 = vadd.f32 %v401, %v462
        %464 = vmatmul.f32.gmra.mxu0 %v374
        %v465 = vpop.f32.mrf.mxu0
        %v466 = vadd.f32 %v401, %v465
        %467 = vmatmul.f32.gmra.mxu0 %v375
        %v468 = vpop.f32.mrf.mxu0
        %v469 = vadd.f32 %v401, %v468
        %470 = vmatmul.f32.gmra.mxu0 %v376
        %v471 = vpop.f32.mrf.mxu0
        %v472 = vadd.f32 %v401, %v471
        %473 = vmatmul.f32.gmra.mxu0 %v377
        %v474 = vpop.f32.mrf.mxu0
        %v475 = vadd.f32 %v401, %v474
        %476 = vmatmul.f32.gmra.mxu0 %v378
        %v477 = vpop.f32.mrf.mxu0
        %v478 = vadd.f32 %v401, %v477
        %479 = vmatmul.f32.gmra.mxu0 %v379
        %v480 = vpop.f32.mrf.mxu0
        %v481 = vadd.f32 %v401, %v480
        %482 = vmatmul.f32.gmra.mxu0 %v380
        %v483 = vpop.f32.mrf.mxu0
        %v484 = vadd.f32 %v401, %v483
        %485 = vmatmul.f32.gmra.mxu0 %v381
        %v486 = vpop.f32.mrf.mxu0
        %v487 = vadd.f32 %v401, %v486
        %488 = vmatmul.f32.gmra.mxu0 %v382
        %v489 = vpop.f32.mrf.mxu0
        %v490 = vadd.f32 %v401, %v489
        %491 = vdwg.mxu0
        %v492 = vmax.f32 %v421, 0.0
        %v493 = vmax.f32 %v424, 0.0
        %v494 = vmax.f32 %v427, 0.0
        %v495 = vmax.f32 %v430, 0.0
        %v496 = vmax.f32 %v433, 0.0
        %v497 = vmax.f32 %v436, 0.0
        %v498 = vmax.f32 %v439, 0.0
        %v499 = vmax.f32 %v442, 0.0
        %v500 = vmax.f32 %v445, 0.0
        %v501 = vmax.f32 %v448, 0.0
        %v502 = vmax.f32 %v451, 0.0
        %v503 = vmax.f32 %v454, 0.0
        %v504 = vmax.f32 %v457, 0.0
        %v505 = vmax.f32 %v460, 0.0
        %v506 = vmax.f32 %v463, 0.0
        %v507 = vmax.f32 %v466, 0.0
        %v508 = vmax.f32 %v469, 0.0
        %v509 = vmax.f32 %v472, 0.0
        %v510 = vmax.f32 %v475, 0.0
        %v511 = vmax.f32 %v478, 0.0
        %v512 = vmax.f32 %v481, 0.0
        %v513 = vmax.f32 %v484, 0.0
        %v514 = vmax.f32 %v487, 0.0
        %v515 = vmax.f32 %v490, 0.0
        %v516 = vld [vmem:[%s1] sm:$0xff]
        %v517 = vld [vmem:[%s1 + $0x8] sm:$0xff]
        %v518 = vld [vmem:[%s1 + $0x10] sm:$0xff]
        %v519 = vld [vmem:[%s1 + $0x18] sm:$0xff]
        %v520 = vld [vmem:[%s1 + $0x20] sm:$0xff]
        %v521 = vld [vmem:[%s1 + $0x28] sm:$0xff]
        %v522 = vld [vmem:[%s1 + $0x30] sm:$0xff]
        %v523 = vld [vmem:[%s1 + $0x38] sm:$0xff]
        %v524 = vld [vmem:[%s1 + $0x40] sm:$0xff]
        %v525 = vld [vmem:[%s1 + $0x48] sm:$0xff]
        %v526 = vld [vmem:[%s1 + $0x50] sm:$0xff]
        %v527 = vld [vmem:[%s1 + $0x58] sm:$0xff]
        %v528 = vld [vmem:[%s1 + $0x60] sm:$0xff]
        %v529 = vld [vmem:[%s1 + $0x68] sm:$0xff]
        %v530 = vld [vmem:[%s1 + $0x70] sm:$0xff]
        %v531 = vld [vmem:[%s1 + $0x78] sm:$0xff]
        %v532 = vld [vmem:[%s1 + $0x80] sm:$0xff]
        %v533 = vld [vmem:[%s1 + $0x88] sm:$0xff]
        %v534 = vld [vmem:[%s1 + $0x90] sm:$0xff]
        %v535 = vld [vmem:[%s1 + $0x98] sm:$0xff]
        %v536 = vld [vmem:[%s1 + $0xa0] sm:$0xff]
        %v537 = vld [vmem:[%s1 + $0xa8] sm:$0xff]
        %v538 = vld [vmem:[%s1 + $0xb0] sm:$0xff]
        %v539 = vld [vmem:[%s1 + $0xb8] sm:$0xff]
        %541 = vset.pattern.permute.xlu0 0
        %542 = vperm.xlu0 %541, %v516
        %v543 = vpop.permute.xlu0 %542
        %546 = vset.pattern.permute.xlu0 0
        %547 = vperm.xlu0 %546, %v517
        %v548 = vpop.permute.xlu0 %547
        %551 = vset.pattern.permute.xlu0 0
        %552 = vperm.xlu0 %551, %v518
        %v553 = vpop.permute.xlu0 %552
        %556 = vset.pattern.permute.xlu0 0
        %557 = vperm.xlu0 %556, %v519
        %v558 = vpop.permute.xlu0 %557
        %561 = vset.pattern.permute.xlu0 0
        %562 = vperm.xlu0 %561, %v520
        %v563 = vpop.permute.xlu0 %562
        %566 = vset.pattern.permute.xlu0 0
        %567 = vperm.xlu0 %566, %v521
        %v568 = vpop.permute.xlu0 %567
        %571 = vset.pattern.permute.xlu0 0
        %572 = vperm.xlu0 %571, %v522
        %v573 = vpop.permute.xlu0 %572
        %576 = vset.pattern.permute.xlu0 0
        %577 = vperm.xlu0 %576, %v523
        %v578 = vpop.permute.xlu0 %577
        %581 = vset.pattern.permute.xlu0 0
        %582 = vperm.xlu0 %581, %v524
        %v583 = vpop.permute.xlu0 %582
        %586 = vset.pattern.permute.xlu0 0
        %587 = vperm.xlu0 %586, %v525
        %v588 = vpop.permute.xlu0 %587
        %591 = vset.pattern.permute.xlu0 0
        %592 = vperm.xlu0 %591, %v526
        %v593 = vpop.permute.xlu0 %592
        %596 = vset.pattern.permute.xlu0 0
        %597 = vperm.xlu0 %596, %v527
        %v598 = vpop.permute.xlu0 %597
        %601 = vset.pattern.permute.xlu0 0
        %602 = vperm.xlu0 %601, %v528
        %v603 = vpop.permute.xlu0 %602
        %606 = vset.pattern.permute.xlu0 0
        %607 = vperm.xlu0 %606, %v529
        %v608 = vpop.permute.xlu0 %607
        %611 = vset.pattern.permute.xlu0 0
        %612 = vperm.xlu0 %611, %v530
        %v613 = vpop.permute.xlu0 %612
        %616 = vset.pattern.permute.xlu0 0
        %617 = vperm.xlu0 %616, %v531
        %v618 = vpop.permute.xlu0 %617
        %621 = vset.pattern.permute.xlu0 0
        %622 = vperm.xlu0 %621, %v532
        %v623 = vpop.permute.xlu0 %622
        %626 = vset.pattern.permute.xlu0 0
        %627 = vperm.xlu0 %626, %v533
        %v628 = vpop.permute.xlu0 %627
        %631 = vset.pattern.permute.xlu0 0
        %632 = vperm.xlu0 %631, %v534
        %v633 = vpop.permute.xlu0 %632
        %636 = vset.pattern.permute.xlu0 0
        %637 = vperm.xlu0 %636, %v535
        %v638 = vpop.permute.xlu0 %637
        %641 = vset.pattern.permute.xlu0 0
        %642 = vperm.xlu0 %641, %v536
        %v643 = vpop.permute.xlu0 %642
        %646 = vset.pattern.permute.xlu0 0
        %647 = vperm.xlu0 %646, %v537
        %v648 = vpop.permute.xlu0 %647
        %651 = vset.pattern.permute.xlu0 0
        %652 = vperm.xlu0 %651, %v538
        %v653 = vpop.permute.xlu0 %652
        %656 = vset.pattern.permute.xlu0 0
        %657 = vperm.xlu0 %656, %v539
        %v658 = vpop.permute.xlu0 %657
        %v660 = vmul.f32 %v492, %v543
        %v661 = vmul.f32 %v493, %v548
        %v662 = vmul.f32 %v494, %v553
        %v663 = vmul.f32 %v495, %v558
        %v664 = vmul.f32 %v496, %v563
        %v665 = vmul.f32 %v497, %v568
        %v666 = vmul.f32 %v498, %v573
        %v667 = vmul.f32 %v499, %v578
        %v668 = vmul.f32 %v500, %v583
        %v669 = vmul.f32 %v501, %v588
        %v670 = vmul.f32 %v502, %v593
        %v671 = vmul.f32 %v503, %v598
        %v672 = vmul.f32 %v504, %v603
        %v673 = vmul.f32 %v505, %v608
        %v674 = vmul.f32 %v506, %v613
        %v675 = vmul.f32 %v507, %v618
        %v676 = vmul.f32 %v508, %v623
        %v677 = vmul.f32 %v509, %v628
        %v678 = vmul.f32 %v510, %v633
        %v679 = vmul.f32 %v511, %v638
        %v680 = vmul.f32 %v512, %v643
        %v681 = vmul.f32 %v513, %v648
        %v682 = vmul.f32 %v514, %v653
        %v683 = vmul.f32 %v515, %v658
        %684 = vst [vmem:[#allocation2] sm:$0xff] %v660
        %685 = vst [vmem:[#allocation2 + $0x8] sm:$0xff] %v661
        %686 = vst [vmem:[#allocation2 + $0x10] sm:$0xff] %v662
        %687 = vst [vmem:[#allocation2 + $0x18] sm:$0xff] %v663
        %688 = vst [vmem:[#allocation2 + $0x20] sm:$0xff] %v664
        %689 = vst [vmem:[#allocation2 + $0x28] sm:$0xff] %v665
        %690 = vst [vmem:[#allocation2 + $0x30] sm:$0xff] %v666
        %691 = vst [vmem:[#allocation2 + $0x38] sm:$0xff] %v667
        %692 = vst [vmem:[#allocation2 + $0x40] sm:$0xff] %v668
        %693 = vst [vmem:[#allocation2 + $0x48] sm:$0xff] %v669
        %694 = vst [vmem:[#allocation2 + $0x50] sm:$0xff] %v670
        %695 = vst [vmem:[#allocation2 + $0x58] sm:$0xff] %v671
        %696 = vst [vmem:[#allocation2 + $0x60] sm:$0xff] %v672
        %697 = vst [vmem:[#allocation2 + $0x68] sm:$0xff] %v673
        %698 = vst [vmem:[#allocation2 + $0x70] sm:$0xff] %v674
        %699 = vst [vmem:[#allocation2 + $0x78] sm:$0xff] %v675
        %700 = vst [vmem:[#allocation2 + $0x80] sm:$0xff] %v676
        %701 = vst [vmem:[#allocation2 + $0x88] sm:$0xff] %v677
        %702 = vst [vmem:[#allocation2 + $0x90] sm:$0xff] %v678
        %703 = vst [vmem:[#allocation2 + $0x98] sm:$0xff] %v679
        %704 = vst [vmem:[#allocation2 + $0xa0] sm:$0xff] %v680
        %705 = vst [vmem:[#allocation2 + $0xa8] sm:$0xff] %v681
        %706 = vst [vmem:[#allocation2 + $0xb0] sm:$0xff] %v682
        %707 = vst [vmem:[#allocation2 + $0xb8] sm:$0xff] %v683
        %v708 = vld [vmem:[#allocation2 + $0xf] sm:$0xff]
        %v709 = vld [vmem:[#allocation2 + $0x17] sm:$0xff]
        %v710 = vld [vmem:[#allocation2 + $0x1f] sm:$0xff]
        %v711 = vld [vmem:[#allocation2 + $0x27] sm:$0xff]
        %v712 = vld [vmem:[#allocation2 + $0x2f] sm:$0xff]
        %v713 = vld [vmem:[#allocation2 + $0x37] sm:$0xff]
        %v714 = vld [vmem:[#allocation2 + $0x3f] sm:$0xff]
        %v715 = vld [vmem:[#allocation2 + $0x47] sm:$0xff]
        %v716 = vld [vmem:[#allocation2 + $0x4f] sm:$0xff]
        %v717 = vld [vmem:[#allocation2 + $0x57] sm:$0xff]
        %v718 = vld [vmem:[#allocation2 + $0x5f] sm:$0xff]
        %v719 = vld [vmem:[#allocation2 + $0x67] sm:$0xff]
        %v720 = vld [vmem:[#allocation2 + $0x6f] sm:$0xff]
        %v721 = vld [vmem:[#allocation2 + $0x77] sm:$0xff]
        %v722 = vld [vmem:[#allocation2 + $0x7f] sm:$0xff]
        %v723 = vld [vmem:[#allocation2 + $0x87] sm:$0xff]
        %v724 = vld [vmem:[#allocation6] sm:$0xff]
        %v725 = vld [vmem:[#allocation6 + $0x8] sm:$0xff]
        %v726 = vld [vmem:[#allocation6 + $0x10] sm:$0xff]
        %v727 = vld [vmem:[#allocation6 + $0x18] sm:$0xff]
        %v728 = vld [vmem:[#allocation6 + $0x20] sm:$0xff]
        %v729 = vld [vmem:[#allocation6 + $0x28] sm:$0xff]
        %v730 = vld [vmem:[#allocation6 + $0x30] sm:$0xff]
        %v731 = vld [vmem:[#allocation6 + $0x38] sm:$0xff]
        %v732 = vld [vmem:[#allocation6 + $0x40] sm:$0xff]
        %v733 = vld [vmem:[#allocation6 + $0x48] sm:$0xff]
        %v734 = vld [vmem:[#allocation6 + $0x50] sm:$0xff]
        %v735 = vld [vmem:[#allocation6 + $0x58] sm:$0xff]
        %v736 = vld [vmem:[#allocation6 + $0x60] sm:$0xff]
        %v737 = vld [vmem:[#allocation6 + $0x68] sm:$0xff]
        %v738 = vld [vmem:[#allocation6 + $0x70] sm:$0xff]
        %v739 = vld [vmem:[#allocation6 + $0x78] sm:$0xff]
        %v740 = vld [vmem:[#allocation2 + $0x10] sm:$0xff]
        %v741 = vld [vmem:[#allocation2 + $0x18] sm:$0xff]
        %v742 = vld [vmem:[#allocation2 + $0x20] sm:$0xff]
        %v743 = vld [vmem:[#allocation2 + $0x28] sm:$0xff]
        %v744 = vld [vmem:[#allocation2 + $0x30] sm:$0xff]
        %v745 = vld [vmem:[#allocation2 + $0x38] sm:$0xff]
        %v746 = vld [vmem:[#allocation2 + $0x40] sm:$0xff]
        %v747 = vld [vmem:[#allocation2 + $0x48] sm:$0xff]
        %v748 = vld [vmem:[#allocation2 + $0x50] sm:$0xff]
        %v749 = vld [vmem:[#allocation2 + $0x58] sm:$0xff]
        %v750 = vld [vmem:[#allocation2 + $0x60] sm:$0xff]
        %v751 = vld [vmem:[#allocation2 + $0x68] sm:$0xff]
        %v752 = vld [vmem:[#allocation2 + $0x70] sm:$0xff]
        %v753 = vld [vmem:[#allocation2 + $0x78] sm:$0xff]
        %v754 = vld [vmem:[#allocation2 + $0x80] sm:$0xff]
        %v755 = vld [vmem:[#allocation2 + $0x88] sm:$0xff]
        %s756 = scalar_lea.vmem [#allocation6], 128
        %v757 = vld [vmem:[%s756] sm:$0xff]
        %v758 = vld [vmem:[%s756 + $0x8] sm:$0xff]
        %v759 = vld [vmem:[%s756 + $0x10] sm:$0xff]
        %v760 = vld [vmem:[%s756 + $0x18] sm:$0xff]
        %v761 = vld [vmem:[%s756 + $0x20] sm:$0xff]
        %v762 = vld [vmem:[%s756 + $0x28] sm:$0xff]
        %v763 = vld [vmem:[%s756 + $0x30] sm:$0xff]
        %v764 = vld [vmem:[%s756 + $0x38] sm:$0xff]
        %v765 = vld [vmem:[%s756 + $0x40] sm:$0xff]
        %v766 = vld [vmem:[%s756 + $0x48] sm:$0xff]
        %v767 = vld [vmem:[%s756 + $0x50] sm:$0xff]
        %v768 = vld [vmem:[%s756 + $0x58] sm:$0xff]
        %v769 = vld [vmem:[%s756 + $0x60] sm:$0xff]
        %v770 = vld [vmem:[%s756 + $0x68] sm:$0xff]
        %v771 = vld [vmem:[%s756 + $0x70] sm:$0xff]
        %v772 = vld [vmem:[%s756 + $0x78] sm:$0xff]
        %773 = vmatpush.msra.mxu0 %v772
        %774 = vmatpush.msra.mxu0 %v771
        %775 = vmatpush.msra.mxu0 %v770
        %776 = vmatpush.msra.mxu0 %v769
        %777 = vmatpush.msra.mxu0 %v768
        %778 = vmatpush.msra.mxu0 %v767
        %779 = vmatpush.msra.mxu0 %v766
        %780 = vmatpush.msra.mxu0 %v765
        %781 = vmatpush.msra.mxu0 %v764
        %782 = vmatpush.msra.mxu0 %v763
        %783 = vmatpush.msra.mxu0 %v762
        %784 = vmatpush.msra.mxu0 %v761
        %785 = vmatpush.msra.mxu0 %v760
        %786 = vmatpush.msra.mxu0 %v759
        %787 = vmatpush.msra.mxu0 %v758
        %788 = vmatpush.msra.mxu0 %v757
        %789 = vmatmul.f32.gmra.mxu0 %v740
        %v790 = vpop.f32.mrf.mxu0
        %v791 = vadd.f32 0.0, %v790
        %792 = vmatmul.f32.gmra.mxu0 %v741
        %v793 = vpop.f32.mrf.mxu0
        %v794 = vadd.f32 0.0, %v793
        %795 = vmatmul.f32.gmra.mxu0 %v742
        %v796 = vpop.f32.mrf.mxu0
        %v797 = vadd.f32 0.0, %v796
        %798 = vmatmul.f32.gmra.mxu0 %v743
        %v799 = vpop.f32.mrf.mxu0
        %v800 = vadd.f32 0.0, %v799
        %801 = vmatmul.f32.gmra.mxu0 %v744
        %v802 = vpop.f32.mrf.mxu0
        %v803 = vadd.f32 0.0, %v802
        %804 = vmatmul.f32.gmra.mxu0 %v745
        %v805 = vpop.f32.mrf.mxu0
        %v806 = vadd.f32 0.0, %v805
        %807 = vmatmul.f32.gmra.mxu0 %v746
        %v808 = vpop.f32.mrf.mxu0
        %v809 = vadd.f32 0.0, %v808
        %810 = vmatmul.f32.gmra.mxu0 %v747
        %v811 = vpop.f32.mrf.mxu0
        %v812 = vadd.f32 0.0, %v811
        %813 = vmatmul.f32.gmra.mxu0 %v748
        %v814 = vpop.f32.mrf.mxu0
        %v815 = vadd.f32 0.0, %v814
        %816 = vmatmul.f32.gmra.mxu0 %v749
        %v817 = vpop.f32.mrf.mxu0
        %v818 = vadd.f32 0.0, %v817
        %819 = vmatmul.f32.gmra.mxu0 %v750
        %v820 = vpop.f32.mrf.mxu0
        %v821 = vadd.f32 0.0, %v820
        %822 = vmatmul.f32.gmra.mxu0 %v751
        %v823 = vpop.f32.mrf.mxu0
        %v824 = vadd.f32 0.0, %v823
        %825 = vmatmul.f32.gmra.mxu0 %v752
        %v826 = vpop.f32.mrf.mxu0
        %v827 = vadd.f32 0.0, %v826
        %828 = vmatmul.f32.gmra.mxu0 %v753
        %v829 = vpop.f32.mrf.mxu0
        %v830 = vadd.f32 0.0, %v829
        %831 = vmatmul.f32.gmra.mxu0 %v754
        %v832 = vpop.f32.mrf.mxu0
        %v833 = vadd.f32 0.0, %v832
        %834 = vmatmul.f32.gmra.mxu0 %v755
        %v835 = vpop.f32.mrf.mxu0
        %v836 = vadd.f32 0.0, %v835
        %837 = vdwg.mxu0
        %838 = vmatpush.msra.mxu0 %v739
        %839 = vmatpush.msra.mxu0 %v738
        %840 = vmatpush.msra.mxu0 %v737
        %841 = vmatpush.msra.mxu0 %v736
        %842 = vmatpush.msra.mxu0 %v735
        %843 = vmatpush.msra.mxu0 %v734
        %844 = vmatpush.msra.mxu0 %v733
        %845 = vmatpush.msra.mxu0 %v732
        %846 = vmatpush.msra.mxu0 %v731
        %847 = vmatpush.msra.mxu0 %v730
        %848 = vmatpush.msra.mxu0 %v729
        %849 = vmatpush.msra.mxu0 %v728
        %850 = vmatpush.msra.mxu0 %v727
        %851 = vmatpush.msra.mxu0 %v726
        %852 = vmatpush.msra.mxu0 %v725
        %853 = vmatpush.msra.mxu0 %v724
        %854 = vmatmul.f32.gmra.mxu0 %v708
        %v855 = vpop.f32.mrf.mxu0
        %v856 = vadd.f32 %v791, %v855
        %857 = vmatmul.f32.gmra.mxu0 %v709
        %v858 = vpop.f32.mrf.mxu0
        %v859 = vadd.f32 %v794, %v858
        %860 = vmatmul.f32.gmra.mxu0 %v710
        %v861 = vpop.f32.mrf.mxu0
        %v862 = vadd.f32 %v797, %v861
        %863 = vmatmul.f32.gmra.mxu0 %v711
        %v864 = vpop.f32.mrf.mxu0
        %v865 = vadd.f32 %v800, %v864
        %866 = vmatmul.f32.gmra.mxu0 %v712
        %v867 = vpop.f32.mrf.mxu0
        %v868 = vadd.f32 %v803, %v867
        %869 = vmatmul.f32.gmra.mxu0 %v713
        %v870 = vpop.f32.mrf.mxu0
        %v871 = vadd.f32 %v806, %v870
        %872 = vmatmul.f32.gmra.mxu0 %v714
        %v873 = vpop.f32.mrf.mxu0
        %v874 = vadd.f32 %v809, %v873
        %875 = vmatmul.f32.gmra.mxu0 %v715
        %v876 = vpop.f32.mrf.mxu0
        %v877 = vadd.f32 %v812, %v876
        %878 = vmatmul.f32.gmra.mxu0 %v716
        %v879 = vpop.f32.mrf.mxu0
        %v880 = vadd.f32 %v815, %v879
        %881 = vmatmul.f32.gmra.mxu0 %v717
        %v882 = vpop.f32.mrf.mxu0
        %v883 = vadd.f32 %v818, %v882
        %884 = vmatmul.f32.gmra.mxu0 %v718
        %v885 = vpop.f32.mrf.mxu0
        %v886 = vadd.f32 %v821, %v885
        %887 = vmatmul.f32.gmra.mxu0 %v719
        %v888 = vpop.f32.mrf.mxu0
        %v889 = vadd.f32 %v824, %v888
        %890 = vmatmul.f32.gmra.mxu0 %v720
        %v891 = vpop.f32.mrf.mxu0
        %v892 = vadd.f32 %v827, %v891
        %893 = vmatmul.f32.gmra.mxu0 %v721
        %v894 = vpop.f32.mrf.mxu0
        %v895 = vadd.f32 %v830, %v894
        %896 = vmatmul.f32.gmra.mxu0 %v722
        %v897 = vpop.f32.mrf.mxu0
        %v898 = vadd.f32 %v833, %v897
        %899 = vmatmul.f32.gmra.mxu0 %v723
        %v900 = vpop.f32.mrf.mxu0
        %v901 = vadd.f32 %v836, %v900
        %902 = vdwg.mxu0
        %v903 = vld [vmem:[#allocation2 + $0x11] sm:$0xff]
        %v904 = vld [vmem:[#allocation2 + $0x19] sm:$0xff]
        %v905 = vld [vmem:[#allocation2 + $0x21] sm:$0xff]
        %v906 = vld [vmem:[#allocation2 + $0x29] sm:$0xff]
        %v907 = vld [vmem:[#allocation2 + $0x31] sm:$0xff]
        %v908 = vld [vmem:[#allocation2 + $0x39] sm:$0xff]
        %v909 = vld [vmem:[#allocation2 + $0x41] sm:$0xff]
        %v910 = vld [vmem:[#allocation2 + $0x49] sm:$0xff]
        %v911 = vld [vmem:[#allocation2 + $0x51] sm:$0xff]
        %v912 = vld [vmem:[#allocation2 + $0x59] sm:$0xff]
        %v913 = vld [vmem:[#allocation2 + $0x61] sm:$0xff]
        %v914 = vld [vmem:[#allocation2 + $0x69] sm:$0xff]
        %v915 = vld [vmem:[#allocation2 + $0x71] sm:$0xff]
        %v916 = vld [vmem:[#allocation2 + $0x79] sm:$0xff]
        %v917 = vld [vmem:[#allocation2 + $0x81] sm:$0xff]
        %v918 = vld [vmem:[#allocation2 + $0x89] sm:$0xff]
        %s919 = scalar_lea.vmem [#allocation6], 256
        %v920 = vld [vmem:[%s919] sm:$0xff]
        %v921 = vld [vmem:[%s919 + $0x8] sm:$0xff]
        %v922 = vld [vmem:[%s919 + $0x10] sm:$0xff]
        %v923 = vld [vmem:[%s919 + $0x18] sm:$0xff]
        %v924 = vld [vmem:[%s919 + $0x20] sm:$0xff]
        %v925 = vld [vmem:[%s919 + $0x28] sm:$0xff]
        %v926 = vld [vmem:[%s919 + $0x30] sm:$0xff]
        %v927 = vld [vmem:[%s919 + $0x38] sm:$0xff]
        %v928 = vld [vmem:[%s919 + $0x40] sm:$0xff]
        %v929 = vld [vmem:[%s919 + $0x48] sm:$0xff]
        %v930 = vld [vmem:[%s919 + $0x50] sm:$0xff]
        %v931 = vld [vmem:[%s919 + $0x58] sm:$0xff]
        %v932 = vld [vmem:[%s919 + $0x60] sm:$0xff]
        %v933 = vld [vmem:[%s919 + $0x68] sm:$0xff]
        %v934 = vld [vmem:[%s919 + $0x70] sm:$0xff]
        %v935 = vld [vmem:[%s919 + $0x78] sm:$0xff]
        %936 = vmatpush.msra.mxu0 %v935
        %937 = vmatpush.msra.mxu0 %v934
        %938 = vmatpush.msra.mxu0 %v933
        %939 = vmatpush.msra.mxu0 %v932
        %940 = vmatpush.msra.mxu0 %v931
        %941 = vmatpush.msra.mxu0 %v930
        %942 = vmatpush.msra.mxu0 %v929
        %943 = vmatpush.msra.mxu0 %v928
        %944 = vmatpush.msra.mxu0 %v927
        %945 = vmatpush.msra.mxu0 %v926
        %946 = vmatpush.msra.mxu0 %v925
        %947 = vmatpush.msra.mxu0 %v924
        %948 = vmatpush.msra.mxu0 %v923
        %949 = vmatpush.msra.mxu0 %v922
        %950 = vmatpush.msra.mxu0 %v921
        %951 = vmatpush.msra.mxu0 %v920
        %952 = vmatmul.f32.gmra.mxu0 %v903
        %v953 = vpop.f32.mrf.mxu0
        %v954 = vadd.f32 0.0, %v953
        %955 = vmatmul.f32.gmra.mxu0 %v904
        %v956 = vpop.f32.mrf.mxu0
        %v957 = vadd.f32 0.0, %v956
        %958 = vmatmul.f32.gmra.mxu0 %v905
        %v959 = vpop.f32.mrf.mxu0
        %v960 = vadd.f32 0.0, %v959
        %961 = vmatmul.f32.gmra.mxu0 %v906
        %v962 = vpop.f32.mrf.mxu0
        %v963 = vadd.f32 0.0, %v962
        %964 = vmatmul.f32.gmra.mxu0 %v907
        %v965 = vpop.f32.mrf.mxu0
        %v966 = vadd.f32 0.0, %v965
        %967 = vmatmul.f32.gmra.mxu0 %v908
        %v968 = vpop.f32.mrf.mxu0
        %v969 = vadd.f32 0.0, %v968
        %970 = vmatmul.f32.gmra.mxu0 %v909
        %v971 = vpop.f32.mrf.mxu0
        %v972 = vadd.f32 0.0, %v971
        %973 = vmatmul.f32.gmra.mxu0 %v910
        %v974 = vpop.f32.mrf.mxu0
        %v975 = vadd.f32 0.0, %v974
        %976 = vmatmul.f32.gmra.mxu0 %v911
        %v977 = vpop.f32.mrf.mxu0
        %v978 = vadd.f32 0.0, %v977
        %979 = vmatmul.f32.gmra.mxu0 %v912
        %v980 = vpop.f32.mrf.mxu0
        %v981 = vadd.f32 0.0, %v980
        %982 = vmatmul.f32.gmra.mxu0 %v913
        %v983 = vpop.f32.mrf.mxu0
        %v984 = vadd.f32 0.0, %v983
        %985 = vmatmul.f32.gmra.mxu0 %v914
        %v986 = vpop.f32.mrf.mxu0
        %v987 = vadd.f32 0.0, %v986
        %988 = vmatmul.f32.gmra.mxu0 %v915
        %v989 = vpop.f32.mrf.mxu0
        %v990 = vadd.f32 0.0, %v989
        %991 = vmatmul.f32.gmra.mxu0 %v916
        %v992 = vpop.f32.mrf.mxu0
        %v993 = vadd.f32 0.0, %v992
        %994 = vmatmul.f32.gmra.mxu0 %v917
        %v995 = vpop.f32.mrf.mxu0
        %v996 = vadd.f32 0.0, %v995
        %997 = vmatmul.f32.gmra.mxu0 %v918
        %v998 = vpop.f32.mrf.mxu0
        %v999 = vadd.f32 0.0, %v998
        %1000 = vdwg.mxu0
        %v1001 = vadd.f32 %v856, %v954
        %v1002 = vadd.f32 %v859, %v957
        %v1003 = vadd.f32 %v862, %v960
        %v1004 = vadd.f32 %v865, %v963
        %v1005 = vadd.f32 %v868, %v966
        %v1006 = vadd.f32 %v871, %v969
        %v1007 = vadd.f32 %v874, %v972
        %v1008 = vadd.f32 %v877, %v975
        %v1009 = vadd.f32 %v880, %v978
        %v1010 = vadd.f32 %v883, %v981
        %v1011 = vadd.f32 %v886, %v984
        %v1012 = vadd.f32 %v889, %v987
        %v1013 = vadd.f32 %v892, %v990
        %v1014 = vadd.f32 %v895, %v993
        %v1015 = vadd.f32 %v898, %v996
        %v1016 = vadd.f32 %v901, %v999
        %v1017 = vld [vmem:[#allocation2 + $0x1f] sm:$0xff]
        %v1018 = vld [vmem:[#allocation2 + $0x27] sm:$0xff]
        %v1019 = vld [vmem:[#allocation2 + $0x2f] sm:$0xff]
        %v1020 = vld [vmem:[#allocation2 + $0x37] sm:$0xff]
        %v1021 = vld [vmem:[#allocation2 + $0x3f] sm:$0xff]
        %v1022 = vld [vmem:[#allocation2 + $0x47] sm:$0xff]
        %v1023 = vld [vmem:[#allocation2 + $0x4f] sm:$0xff]
        %v1024 = vld [vmem:[#allocation2 + $0x57] sm:$0xff]
        %v1025 = vld [vmem:[#allocation2 + $0x5f] sm:$0xff]
        %v1026 = vld [vmem:[#allocation2 + $0x67] sm:$0xff]
        %v1027 = vld [vmem:[#allocation2 + $0x6f] sm:$0xff]
        %v1028 = vld [vmem:[#allocation2 + $0x77] sm:$0xff]
        %v1029 = vld [vmem:[#allocation2 + $0x7f] sm:$0xff]
        %v1030 = vld [vmem:[#allocation2 + $0x87] sm:$0xff]
        %v1031 = vld [vmem:[#allocation2 + $0x8f] sm:$0xff]
        %v1032 = vld [vmem:[#allocation2 + $0x97] sm:$0xff]
        %s1033 = scalar_lea.vmem [#allocation6], 384
        %v1034 = vld [vmem:[%s1033] sm:$0xff]
        %v1035 = vld [vmem:[%s1033 + $0x8] sm:$0xff]
        %v1036 = vld [vmem:[%s1033 + $0x10] sm:$0xff]
        %v1037 = vld [vmem:[%s1033 + $0x18] sm:$0xff]
        %v1038 = vld [vmem:[%s1033 + $0x20] sm:$0xff]
        %v1039 = vld [vmem:[%s1033 + $0x28] sm:$0xff]
        %v1040 = vld [vmem:[%s1033 + $0x30] sm:$0xff]
        %v1041 = vld [vmem:[%s1033 + $0x38] sm:$0xff]
        %v1042 = vld [vmem:[%s1033 + $0x40] sm:$0xff]
        %v1043 = vld [vmem:[%s1033 + $0x48] sm:$0xff]
        %v1044 = vld [vmem:[%s1033 + $0x50] sm:$0xff]
        %v1045 = vld [vmem:[%s1033 + $0x58] sm:$0xff]
        %v1046 = vld [vmem:[%s1033 + $0x60] sm:$0xff]
        %v1047 = vld [vmem:[%s1033 + $0x68] sm:$0xff]
        %v1048 = vld [vmem:[%s1033 + $0x70] sm:$0xff]
        %v1049 = vld [vmem:[%s1033 + $0x78] sm:$0xff]
        %1050 = vmatpush.msra.mxu0 %v1049
        %1051 = vmatpush.msra.mxu0 %v1048
        %1052 = vmatpush.msra.mxu0 %v1047
        %1053 = vmatpush.msra.mxu0 %v1046
        %1054 = vmatpush.msra.mxu0 %v1045
        %1055 = vmatpush.msra.mxu0 %v1044
        %1056 = vmatpush.msra.mxu0 %v1043
        %1057 = vmatpush.msra.mxu0 %v1042
        %1058 = vmatpush.msra.mxu0 %v1041
        %1059 = vmatpush.msra.mxu0 %v1040
        %1060 = vmatpush.msra.mxu0 %v1039
        %1061 = vmatpush.msra.mxu0 %v1038
        %1062 = vmatpush.msra.mxu0 %v1037
        %1063 = vmatpush.msra.mxu0 %v1036
        %1064 = vmatpush.msra.mxu0 %v1035
        %1065 = vmatpush.msra.mxu0 %v1034
        %1066 = vmatmul.f32.gmra.mxu0 %v1017
        %v1067 = vpop.f32.mrf.mxu0
        %v1068 = vadd.f32 0.0, %v1067
        %1069 = vmatmul.f32.gmra.mxu0 %v1018
        %v1070 = vpop.f32.mrf.mxu0
        %v1071 = vadd.f32 0.0, %v1070
        %1072 = vmatmul.f32.gmra.mxu0 %v1019
        %v1073 = vpop.f32.mrf.mxu0
        %v1074 = vadd.f32 0.0, %v1073
        %1075 = vmatmul.f32.gmra.mxu0 %v1020
        %v1076 = vpop.f32.mrf.mxu0
        %v1077 = vadd.f32 0.0, %v1076
        %1078 = vmatmul.f32.gmra.mxu0 %v1021
        %v1079 = vpop.f32.mrf.mxu0
        %v1080 = vadd.f32 0.0, %v1079
        %1081 = vmatmul.f32.gmra.mxu0 %v1022
        %v1082 = vpop.f32.mrf.mxu0
        %v1083 = vadd.f32 0.0, %v1082
        %1084 = vmatmul.f32.gmra.mxu0 %v1023
        %v1085 = vpop.f32.mrf.mxu0
        %v1086 = vadd.f32 0.0, %v1085
        %1087 = vmatmul.f32.gmra.mxu0 %v1024
        %v1088 = vpop.f32.mrf.mxu0
        %v1089 = vadd.f32 0.0, %v1088
        %1090 = vmatmul.f32.gmra.mxu0 %v1025
        %v1091 = vpop.f32.mrf.mxu0
        %v1092 = vadd.f32 0.0, %v1091
        %1093 = vmatmul.f32.gmra.mxu0 %v1026
        %v1094 = vpop.f32.mrf.mxu0
        %v1095 = vadd.f32 0.0, %v1094
        %1096 = vmatmul.f32.gmra.mxu0 %v1027
        %v1097 = vpop.f32.mrf.mxu0
        %v1098 = vadd.f32 0.0, %v1097
        %1099 = vmatmul.f32.gmra.mxu0 %v1028
        %v1100 = vpop.f32.mrf.mxu0
        %v1101 = vadd.f32 0.0, %v1100
        %1102 = vmatmul.f32.gmra.mxu0 %v1029
        %v1103 = vpop.f32.mrf.mxu0
        %v1104 = vadd.f32 0.0, %v1103
        %1105 = vmatmul.f32.gmra.mxu0 %v1030
        %v1106 = vpop.f32.mrf.mxu0
        %v1107 = vadd.f32 0.0, %v1106
        %1108 = vmatmul.f32.gmra.mxu0 %v1031
        %v1109 = vpop.f32.mrf.mxu0
        %v1110 = vadd.f32 0.0, %v1109
        %1111 = vmatmul.f32.gmra.mxu0 %v1032
        %v1112 = vpop.f32.mrf.mxu0
        %v1113 = vadd.f32 0.0, %v1112
        %1114 = vdwg.mxu0
        %v1115 = vadd.f32 %v1001, %v1068
        %v1116 = vadd.f32 %v1002, %v1071
        %v1117 = vadd.f32 %v1003, %v1074
        %v1118 = vadd.f32 %v1004, %v1077
        %v1119 = vadd.f32 %v1005, %v1080
        %v1120 = vadd.f32 %v1006, %v1083
        %v1121 = vadd.f32 %v1007, %v1086
        %v1122 = vadd.f32 %v1008, %v1089
        %v1123 = vadd.f32 %v1009, %v1092
        %v1124 = vadd.f32 %v1010, %v1095
        %v1125 = vadd.f32 %v1011, %v1098
        %v1126 = vadd.f32 %v1012, %v1101
        %v1127 = vadd.f32 %v1013, %v1104
        %v1128 = vadd.f32 %v1014, %v1107
        %v1129 = vadd.f32 %v1015, %v1110
        %v1130 = vadd.f32 %v1016, %v1113
        %v1131 = vld [vmem:[#allocation2 + $0x20] sm:$0xff]
        %v1132 = vld [vmem:[#allocation2 + $0x28] sm:$0xff]
        %v1133 = vld [vmem:[#allocation2 + $0x30] sm:$0xff]
        %v1134 = vld [vmem:[#allocation2 + $0x38] sm:$0xff]
        %v1135 = vld [vmem:[#allocation2 + $0x40] sm:$0xff]
        %v1136 = vld [vmem:[#allocation2 + $0x48] sm:$0xff]
        %v1137 = vld [vmem:[#allocation2 + $0x50] sm:$0xff]
        %v1138 = vld [vmem:[#allocation2 + $0x58] sm:$0xff]
        %v1139 = vld [vmem:[#allocation2 + $0x60] sm:$0xff]
        %v1140 = vld [vmem:[#allocation2 + $0x68] sm:$0xff]
        %v1141 = vld [vmem:[#allocation2 + $0x70] sm:$0xff]
        %v1142 = vld [vmem:[#allocation2 + $0x78] sm:$0xff]
        %v1143 = vld [vmem:[#allocation2 + $0x80] sm:$0xff]
        %v1144 = vld [vmem:[#allocation2 + $0x88] sm:$0xff]
        %v1145 = vld [vmem:[#allocation2 + $0x90] sm:$0xff]
        %v1146 = vld [vmem:[#allocation2 + $0x98] sm:$0xff]
        %s1147 = scalar_lea.vmem [#allocation6], 512
        %v1148 = vld [vmem:[%s1147] sm:$0xff]
        %v1149 = vld [vmem:[%s1147 + $0x8] sm:$0xff]
        %v1150 = vld [vmem:[%s1147 + $0x10] sm:$0xff]
        %v1151 = vld [vmem:[%s1147 + $0x18] sm:$0xff]
        %v1152 = vld [vmem:[%s1147 + $0x20] sm:$0xff]
        %v1153 = vld [vmem:[%s1147 + $0x28] sm:$0xff]
        %v1154 = vld [vmem:[%s1147 + $0x30] sm:$0xff]
        %v1155 = vld [vmem:[%s1147 + $0x38] sm:$0xff]
        %v1156 = vld [vmem:[%s1147 + $0x40] sm:$0xff]
        %v1157 = vld [vmem:[%s1147 + $0x48] sm:$0xff]
        %v1158 = vld [vmem:[%s1147 + $0x50] sm:$0xff]
        %v1159 = vld [vmem:[%s1147 + $0x58] sm:$0xff]
        %v1160 = vld [vmem:[%s1147 + $0x60] sm:$0xff]
        %v1161 = vld [vmem:[%s1147 + $0x68] sm:$0xff]
        %v1162 = vld [vmem:[%s1147 + $0x70] sm:$0xff]
        %v1163 = vld [vmem:[%s1147 + $0x78] sm:$0xff]
        %1164 = vmatpush.msra.mxu0 %v1163
        %1165 = vmatpush.msra.mxu0 %v1162
        %1166 = vmatpush.msra.mxu0 %v1161
        %1167 = vmatpush.msra.mxu0 %v1160
        %1168 = vmatpush.msra.mxu0 %v1159
        %1169 = vmatpush.msra.mxu0 %v1158
        %1170 = vmatpush.msra.mxu0 %v1157
        %1171 = vmatpush.msra.mxu0 %v1156
        %1172 = vmatpush.msra.mxu0 %v1155
        %1173 = vmatpush.msra.mxu0 %v1154
        %1174 = vmatpush.msra.mxu0 %v1153
        %1175 = vmatpush.msra.mxu0 %v1152
        %1176 = vmatpush.msra.mxu0 %v1151
        %1177 = vmatpush.msra.mxu0 %v1150
        %1178 = vmatpush.msra.mxu0 %v1149
        %1179 = vmatpush.msra.mxu0 %v1148
        %1180 = vmatmul.f32.gmra.mxu0 %v1131
        %v1181 = vpop.f32.mrf.mxu0
        %v1182 = vadd.f32 0.0, %v1181
        %1183 = vmatmul.f32.gmra.mxu0 %v1132
        %v1184 = vpop.f32.mrf.mxu0
        %v1185 = vadd.f32 0.0, %v1184
        %1186 = vmatmul.f32.gmra.mxu0 %v1133
        %v1187 = vpop.f32.mrf.mxu0
        %v1188 = vadd.f32 0.0, %v1187
        %1189 = vmatmul.f32.gmra.mxu0 %v1134
        %v1190 = vpop.f32.mrf.mxu0
        %v1191 = vadd.f32 0.0, %v1190
        %1192 = vmatmul.f32.gmra.mxu0 %v1135
        %v1193 = vpop.f32.mrf.mxu0
        %v1194 = vadd.f32 0.0, %v1193
        %1195 = vmatmul.f32.gmra.mxu0 %v1136
        %v1196 = vpop.f32.mrf.mxu0
        %v1197 = vadd.f32 0.0, %v1196
        %1198 = vmatmul.f32.gmra.mxu0 %v1137
        %v1199 = vpop.f32.mrf.mxu0
        %v1200 = vadd.f32 0.0, %v1199
        %1201 = vmatmul.f32.gmra.mxu0 %v1138
        %v1202 = vpop.f32.mrf.mxu0
        %v1203 = vadd.f32 0.0, %v1202
        %1204 = vmatmul.f32.gmra.mxu0 %v1139
        %v1205 = vpop.f32.mrf.mxu0
        %v1206 = vadd.f32 0.0, %v1205
        %1207 = vmatmul.f32.gmra.mxu0 %v1140
        %v1208 = vpop.f32.mrf.mxu0
        %v1209 = vadd.f32 0.0, %v1208
        %1210 = vmatmul.f32.gmra.mxu0 %v1141
        %v1211 = vpop.f32.mrf.mxu0
        %v1212 = vadd.f32 0.0, %v1211
        %1213 = vmatmul.f32.gmra.mxu0 %v1142
        %v1214 = vpop.f32.mrf.mxu0
        %v1215 = vadd.f32 0.0, %v1214
        %1216 = vmatmul.f32.gmra.mxu0 %v1143
        %v1217 = vpop.f32.mrf.mxu0
        %v1218 = vadd.f32 0.0, %v1217
        %1219 = vmatmul.f32.gmra.mxu0 %v1144
        %v1220 = vpop.f32.mrf.mxu0
        %v1221 = vadd.f32 0.0, %v1220
        %1222 = vmatmul.f32.gmra.mxu0 %v1145
        %v1223 = vpop.f32.mrf.mxu0
        %v1224 = vadd.f32 0.0, %v1223
        %1225 = vmatmul.f32.gmra.mxu0 %v1146
        %v1226 = vpop.f32.mrf.mxu0
        %v1227 = vadd.f32 0.0, %v1226
        %1228 = vdwg.mxu0
        %v1229 = vadd.f32 %v1115, %v1182
        %v1230 = vadd.f32 %v1116, %v1185
        %v1231 = vadd.f32 %v1117, %v1188
        %v1232 = vadd.f32 %v1118, %v1191
        %v1233 = vadd.f32 %v1119, %v1194
        %v1234 = vadd.f32 %v1120, %v1197
        %v1235 = vadd.f32 %v1121, %v1200
        %v1236 = vadd.f32 %v1122, %v1203
        %v1237 = vadd.f32 %v1123, %v1206
        %v1238 = vadd.f32 %v1124, %v1209
        %v1239 = vadd.f32 %v1125, %v1212
        %v1240 = vadd.f32 %v1126, %v1215
        %v1241 = vadd.f32 %v1127, %v1218
        %v1242 = vadd.f32 %v1128, %v1221
        %v1243 = vadd.f32 %v1129, %v1224
        %v1244 = vadd.f32 %v1130, %v1227
        %v1245 = vld [vmem:[#allocation2 + $0x21] sm:$0xff]
        %v1246 = vld [vmem:[#allocation2 + $0x29] sm:$0xff]
        %v1247 = vld [vmem:[#allocation2 + $0x31] sm:$0xff]
        %v1248 = vld [vmem:[#allocation2 + $0x39] sm:$0xff]
        %v1249 = vld [vmem:[#allocation2 + $0x41] sm:$0xff]
        %v1250 = vld [vmem:[#allocation2 + $0x49] sm:$0xff]
        %v1251 = vld [vmem:[#allocation2 + $0x51] sm:$0xff]
        %v1252 = vld [vmem:[#allocation2 + $0x59] sm:$0xff]
        %v1253 = vld [vmem:[#allocation2 + $0x61] sm:$0xff]
        %v1254 = vld [vmem:[#allocation2 + $0x69] sm:$0xff]
        %v1255 = vld [vmem:[#allocation2 + $0x71] sm:$0xff]
        %v1256 = vld [vmem:[#allocation2 + $0x79] sm:$0xff]
        %v1257 = vld [vmem:[#allocation2 + $0x81] sm:$0xff]
        %v1258 = vld [vmem:[#allocation2 + $0x89] sm:$0xff]
        %v1259 = vld [vmem:[#allocation2 + $0x91] sm:$0xff]
        %v1260 = vld [vmem:[#allocation2 + $0x99] sm:$0xff]
        %s1261 = scalar_lea.vmem [#allocation6], 640
        %v1262 = vld [vmem:[%s1261] sm:$0xff]
        %v1263 = vld [vmem:[%s1261 + $0x8] sm:$0xff]
        %v1264 = vld [vmem:[%s1261 + $0x10] sm:$0xff]
        %v1265 = vld [vmem:[%s1261 + $0x18] sm:$0xff]
        %v1266 = vld [vmem:[%s1261 + $0x20] sm:$0xff]
        %v1267 = vld [vmem:[%s1261 + $0x28] sm:$0xff]
        %v1268 = vld [vmem:[%s1261 + $0x30] sm:$0xff]
        %v1269 = vld [vmem:[%s1261 + $0x38] sm:$0xff]
        %v1270 = vld [vmem:[%s1261 + $0x40] sm:$0xff]
        %v1271 = vld [vmem:[%s1261 + $0x48] sm:$0xff]
        %v1272 = vld [vmem:[%s1261 + $0x50] sm:$0xff]
        %v1273 = vld [vmem:[%s1261 + $0x58] sm:$0xff]
        %v1274 = vld [vmem:[%s1261 + $0x60] sm:$0xff]
        %v1275 = vld [vmem:[%s1261 + $0x68] sm:$0xff]
        %v1276 = vld [vmem:[%s1261 + $0x70] sm:$0xff]
        %v1277 = vld [vmem:[%s1261 + $0x78] sm:$0xff]
        %1278 = vmatpush.msra.mxu0 %v1277
        %1279 = vmatpush.msra.mxu0 %v1276
        %1280 = vmatpush.msra.mxu0 %v1275
        %1281 = vmatpush.msra.mxu0 %v1274
        %1282 = vmatpush.msra.mxu0 %v1273
        %1283 = vmatpush.msra.mxu0 %v1272
        %1284 = vmatpush.msra.mxu0 %v1271
        %1285 = vmatpush.msra.mxu0 %v1270
        %1286 = vmatpush.msra.mxu0 %v1269
        %1287 = vmatpush.msra.mxu0 %v1268
        %1288 = vmatpush.msra.mxu0 %v1267
        %1289 = vmatpush.msra.mxu0 %v1266
        %1290 = vmatpush.msra.mxu0 %v1265
        %1291 = vmatpush.msra.mxu0 %v1264
        %1292 = vmatpush.msra.mxu0 %v1263
        %1293 = vmatpush.msra.mxu0 %v1262
        %1294 = vmatmul.f32.gmra.mxu0 %v1245
        %v1295 = vpop.f32.mrf.mxu0
        %v1296 = vadd.f32 0.0, %v1295
        %1297 = vmatmul.f32.gmra.mxu0 %v1246
        %v1298 = vpop.f32.mrf.mxu0
        %v1299 = vadd.f32 0.0, %v1298
        %1300 = vmatmul.f32.gmra.mxu0 %v1247
        %v1301 = vpop.f32.mrf.mxu0
        %v1302 = vadd.f32 0.0, %v1301
        %1303 = vmatmul.f32.gmra.mxu0 %v1248
        %v1304 = vpop.f32.mrf.mxu0
        %v1305 = vadd.f32 0.0, %v1304
        %1306 = vmatmul.f32.gmra.mxu0 %v1249
        %v1307 = vpop.f32.mrf.mxu0
        %v1308 = vadd.f32 0.0, %v1307
        %1309 = vmatmul.f32.gmra.mxu0 %v1250
        %v1310 = vpop.f32.mrf.mxu0
        %v1311 = vadd.f32 0.0, %v1310
        %1312 = vmatmul.f32.gmra.mxu0 %v1251
        %v1313 = vpop.f32.mrf.mxu0
        %v1314 = vadd.f32 0.0, %v1313
        %1315 = vmatmul.f32.gmra.mxu0 %v1252
        %v1316 = vpop.f32.mrf.mxu0
        %v1317 = vadd.f32 0.0, %v1316
        %1318 = vmatmul.f32.gmra.mxu0 %v1253
        %v1319 = vpop.f32.mrf.mxu0
        %v1320 = vadd.f32 0.0, %v1319
        %1321 = vmatmul.f32.gmra.mxu0 %v1254
        %v1322 = vpop.f32.mrf.mxu0
        %v1323 = vadd.f32 0.0, %v1322
        %1324 = vmatmul.f32.gmra.mxu0 %v1255
        %v1325 = vpop.f32.mrf.mxu0
        %v1326 = vadd.f32 0.0, %v1325
        %1327 = vmatmul.f32.gmra.mxu0 %v1256
        %v1328 = vpop.f32.mrf.mxu0
        %v1329 = vadd.f32 0.0, %v1328
        %1330 = vmatmul.f32.gmra.mxu0 %v1257
        %v1331 = vpop.f32.mrf.mxu0
        %v1332 = vadd.f32 0.0, %v1331
        %1333 = vmatmul.f32.gmra.mxu0 %v1258
        %v1334 = vpop.f32.mrf.mxu0
        %v1335 = vadd.f32 0.0, %v1334
        %1336 = vmatmul.f32.gmra.mxu0 %v1259
        %v1337 = vpop.f32.mrf.mxu0
        %v1338 = vadd.f32 0.0, %v1337
        %1339 = vmatmul.f32.gmra.mxu0 %v1260
        %v1340 = vpop.f32.mrf.mxu0
        %v1341 = vadd.f32 0.0, %v1340
        %1342 = vdwg.mxu0
        %v1343 = vadd.f32 %v1229, %v1296
        %v1344 = vadd.f32 %v1230, %v1299
        %v1345 = vadd.f32 %v1231, %v1302
        %v1346 = vadd.f32 %v1232, %v1305
        %v1347 = vadd.f32 %v1233, %v1308
        %v1348 = vadd.f32 %v1234, %v1311
        %v1349 = vadd.f32 %v1235, %v1314
        %v1350 = vadd.f32 %v1236, %v1317
        %v1351 = vadd.f32 %v1237, %v1320
        %v1352 = vadd.f32 %v1238, %v1323
        %v1353 = vadd.f32 %v1239, %v1326
        %v1354 = vadd.f32 %v1240, %v1329
        %v1355 = vadd.f32 %v1241, %v1332
        %v1356 = vadd.f32 %v1242, %v1335
        %v1357 = vadd.f32 %v1243, %v1338
        %v1358 = vadd.f32 %v1244, %v1341
        %v1359 = vld [vmem:[#allocation2 + $0x2f] sm:$0xff]
        %v1360 = vld [vmem:[#allocation2 + $0x37] sm:$0xff]
        %v1361 = vld [vmem:[#allocation2 + $0x3f] sm:$0xff]
        %v1362 = vld [vmem:[#allocation2 + $0x47] sm:$0xff]
        %v1363 = vld [vmem:[#allocation2 + $0x4f] sm:$0xff]
        %v1364 = vld [vmem:[#allocation2 + $0x57] sm:$0xff]
        %v1365 = vld [vmem:[#allocation2 + $0x5f] sm:$0xff]
        %v1366 = vld [vmem:[#allocation2 + $0x67] sm:$0xff]
        %v1367 = vld [vmem:[#allocation2 + $0x6f] sm:$0xff]
        %v1368 = vld [vmem:[#allocation2 + $0x77] sm:$0xff]
        %v1369 = vld [vmem:[#allocation2 + $0x7f] sm:$0xff]
        %v1370 = vld [vmem:[#allocation2 + $0x87] sm:$0xff]
        %v1371 = vld [vmem:[#allocation2 + $0x8f] sm:$0xff]
        %v1372 = vld [vmem:[#allocation2 + $0x97] sm:$0xff]
        %v1373 = vld [vmem:[#allocation2 + $0x9f] sm:$0xff]
        %v1374 = vld [vmem:[#allocation2 + $0xa7] sm:$0xff]
        %s1375 = scalar_lea.vmem [#allocation6], 768
        %v1376 = vld [vmem:[%s1375] sm:$0xff]
        %v1377 = vld [vmem:[%s1375 + $0x8] sm:$0xff]
        %v1378 = vld [vmem:[%s1375 + $0x10] sm:$0xff]
        %v1379 = vld [vmem:[%s1375 + $0x18] sm:$0xff]
        %v1380 = vld [vmem:[%s1375 + $0x20] sm:$0xff]
        %v1381 = vld [vmem:[%s1375 + $0x28] sm:$0xff]
        %v1382 = vld [vmem:[%s1375 + $0x30] sm:$0xff]
        %v1383 = vld [vmem:[%s1375 + $0x38] sm:$0xff]
        %v1384 = vld [vmem:[%s1375 + $0x40] sm:$0xff]
        %v1385 = vld [vmem:[%s1375 + $0x48] sm:$0xff]
        %v1386 = vld [vmem:[%s1375 + $0x50] sm:$0xff]
        %v1387 = vld [vmem:[%s1375 + $0x58] sm:$0xff]
        %v1388 = vld [vmem:[%s1375 + $0x60] sm:$0xff]
        %v1389 = vld [vmem:[%s1375 + $0x68] sm:$0xff]
        %v1390 = vld [vmem:[%s1375 + $0x70] sm:$0xff]
        %v1391 = vld [vmem:[%s1375 + $0x78] sm:$0xff]
        %1392 = vmatpush.msra.mxu0 %v1391
        %1393 = vmatpush.msra.mxu0 %v1390
        %1394 = vmatpush.msra.mxu0 %v1389
        %1395 = vmatpush.msra.mxu0 %v1388
        %1396 = vmatpush.msra.mxu0 %v1387
        %1397 = vmatpush.msra.mxu0 %v1386
        %1398 = vmatpush.msra.mxu0 %v1385
        %1399 = vmatpush.msra.mxu0 %v1384
        %1400 = vmatpush.msra.mxu0 %v1383
        %1401 = vmatpush.msra.mxu0 %v1382
        %1402 = vmatpush.msra.mxu0 %v1381
        %1403 = vmatpush.msra.mxu0 %v1380
        %1404 = vmatpush.msra.mxu0 %v1379
        %1405 = vmatpush.msra.mxu0 %v1378
        %1406 = vmatpush.msra.mxu0 %v1377
        %1407 = vmatpush.msra.mxu0 %v1376
        %1408 = vmatmul.f32.gmra.mxu0 %v1359
        %v1409 = vpop.f32.mrf.mxu0
        %v1410 = vadd.f32 0.0, %v1409
        %1411 = vmatmul.f32.gmra.mxu0 %v1360
        %v1412 = vpop.f32.mrf.mxu0
        %v1413 = vadd.f32 0.0, %v1412
        %1414 = vmatmul.f32.gmra.mxu0 %v1361
        %v1415 = vpop.f32.mrf.mxu0
        %v1416 = vadd.f32 0.0, %v1415
        %1417 = vmatmul.f32.gmra.mxu0 %v1362
        %v1418 = vpop.f32.mrf.mxu0
        %v1419 = vadd.f32 0.0, %v1418
        %1420 = vmatmul.f32.gmra.mxu0 %v1363
        %v1421 = vpop.f32.mrf.mxu0
        %v1422 = vadd.f32 0.0, %v1421
        %1423 = vmatmul.f32.gmra.mxu0 %v1364
        %v1424 = vpop.f32.mrf.mxu0
        %v1425 = vadd.f32 0.0, %v1424
        %1426 = vmatmul.f32.gmra.mxu0 %v1365
        %v1427 = vpop.f32.mrf.mxu0
        %v1428 = vadd.f32 0.0, %v1427
        %1429 = vmatmul.f32.gmra.mxu0 %v1366
        %v1430 = vpop.f32.mrf.mxu0
        %v1431 = vadd.f32 0.0, %v1430
        %1432 = vmatmul.f32.gmra.mxu0 %v1367
        %v1433 = vpop.f32.mrf.mxu0
        %v1434 = vadd.f32 0.0, %v1433
        %1435 = vmatmul.f32.gmra.mxu0 %v1368
        %v1436 = vpop.f32.mrf.mxu0
        %v1437 = vadd.f32 0.0, %v1436
        %1438 = vmatmul.f32.gmra.mxu0 %v1369
        %v1439 = vpop.f32.mrf.mxu0
        %v1440 = vadd.f32 0.0, %v1439
        %1441 = vmatmul.f32.gmra.mxu0 %v1370
        %v1442 = vpop.f32.mrf.mxu0
        %v1443 = vadd.f32 0.0, %v1442
        %1444 = vmatmul.f32.gmra.mxu0 %v1371
        %v1445 = vpop.f32.mrf.mxu0
        %v1446 = vadd.f32 0.0, %v1445
        %1447 = vmatmul.f32.gmra.mxu0 %v1372
        %v1448 = vpop.f32.mrf.mxu0
        %v1449 = vadd.f32 0.0, %v1448
        %1450 = vmatmul.f32.gmra.mxu0 %v1373
        %v1451 = vpop.f32.mrf.mxu0
        %v1452 = vadd.f32 0.0, %v1451
        %1453 = vmatmul.f32.gmra.mxu0 %v1374
        %v1454 = vpop.f32.mrf.mxu0
        %v1455 = vadd.f32 0.0, %v1454
        %1456 = vdwg.mxu0
        %v1457 = vadd.f32 %v1343, %v1410
        %v1458 = vadd.f32 %v1344, %v1413
        %v1459 = vadd.f32 %v1345, %v1416
        %v1460 = vadd.f32 %v1346, %v1419
        %v1461 = vadd.f32 %v1347, %v1422
        %v1462 = vadd.f32 %v1348, %v1425
        %v1463 = vadd.f32 %v1349, %v1428
        %v1464 = vadd.f32 %v1350, %v1431
        %v1465 = vadd.f32 %v1351, %v1434
        %v1466 = vadd.f32 %v1352, %v1437
        %v1467 = vadd.f32 %v1353, %v1440
        %v1468 = vadd.f32 %v1354, %v1443
        %v1469 = vadd.f32 %v1355, %v1446
        %v1470 = vadd.f32 %v1356, %v1449
        %v1471 = vadd.f32 %v1357, %v1452
        %v1472 = vadd.f32 %v1358, %v1455
        %v1473 = vld [vmem:[#allocation2 + $0x30] sm:$0xff]
        %v1474 = vld [vmem:[#allocation2 + $0x38] sm:$0xff]
        %v1475 = vld [vmem:[#allocation2 + $0x40] sm:$0xff]
        %v1476 = vld [vmem:[#allocation2 + $0x48] sm:$0xff]
        %v1477 = vld [vmem:[#allocation2 + $0x50] sm:$0xff]
        %v1478 = vld [vmem:[#allocation2 + $0x58] sm:$0xff]
        %v1479 = vld [vmem:[#allocation2 + $0x60] sm:$0xff]
        %v1480 = vld [vmem:[#allocation2 + $0x68] sm:$0xff]
        %v1481 = vld [vmem:[#allocation2 + $0x70] sm:$0xff]
        %v1482 = vld [vmem:[#allocation2 + $0x78] sm:$0xff]
        %v1483 = vld [vmem:[#allocation2 + $0x80] sm:$0xff]
        %v1484 = vld [vmem:[#allocation2 + $0x88] sm:$0xff]
        %v1485 = vld [vmem:[#allocation2 + $0x90] sm:$0xff]
        %v1486 = vld [vmem:[#allocation2 + $0x98] sm:$0xff]
        %v1487 = vld [vmem:[#allocation2 + $0xa0] sm:$0xff]
        %v1488 = vld [vmem:[#allocation2 + $0xa8] sm:$0xff]
        %s1489 = scalar_lea.vmem [#allocation6], 896
        %v1490 = vld [vmem:[%s1489] sm:$0xff]
        %v1491 = vld [vmem:[%s1489 + $0x8] sm:$0xff]
        %v1492 = vld [vmem:[%s1489 + $0x10] sm:$0xff]
        %v1493 = vld [vmem:[%s1489 + $0x18] sm:$0xff]
        %v1494 = vld [vmem:[%s1489 + $0x20] sm:$0xff]
        %v1495 = vld [vmem:[%s1489 + $0x28] sm:$0xff]
        %v1496 = vld [vmem:[%s1489 + $0x30] sm:$0xff]
        %v1497 = vld [vmem:[%s1489 + $0x38] sm:$0xff]
        %v1498 = vld [vmem:[%s1489 + $0x40] sm:$0xff]
        %v1499 = vld [vmem:[%s1489 + $0x48] sm:$0xff]
        %v1500 = vld [vmem:[%s1489 + $0x50] sm:$0xff]
        %v1501 = vld [vmem:[%s1489 + $0x58] sm:$0xff]
        %v1502 = vld [vmem:[%s1489 + $0x60] sm:$0xff]
        %v1503 = vld [vmem:[%s1489 + $0x68] sm:$0xff]
        %v1504 = vld [vmem:[%s1489 + $0x70] sm:$0xff]
        %v1505 = vld [vmem:[%s1489 + $0x78] sm:$0xff]
        %1506 = vmatpush.msra.mxu0 %v1505
        %1507 = vmatpush.msra.mxu0 %v1504
        %1508 = vmatpush.msra.mxu0 %v1503
        %1509 = vmatpush.msra.mxu0 %v1502
        %1510 = vmatpush.msra.mxu0 %v1501
        %1511 = vmatpush.msra.mxu0 %v1500
        %1512 = vmatpush.msra.mxu0 %v1499
        %1513 = vmatpush.msra.mxu0 %v1498
        %1514 = vmatpush.msra.mxu0 %v1497
        %1515 = vmatpush.msra.mxu0 %v1496
        %1516 = vmatpush.msra.mxu0 %v1495
        %1517 = vmatpush.msra.mxu0 %v1494
        %1518 = vmatpush.msra.mxu0 %v1493
        %1519 = vmatpush.msra.mxu0 %v1492
        %1520 = vmatpush.msra.mxu0 %v1491
        %1521 = vmatpush.msra.mxu0 %v1490
        %1522 = vmatmul.f32.gmra.mxu0 %v1473
        %v1523 = vpop.f32.mrf.mxu0
        %v1524 = vadd.f32 0.0, %v1523
        %1525 = vmatmul.f32.gmra.mxu0 %v1474
        %v1526 = vpop.f32.mrf.mxu0
        %v1527 = vadd.f32 0.0, %v1526
        %1528 = vmatmul.f32.gmra.mxu0 %v1475
        %v1529 = vpop.f32.mrf.mxu0
        %v1530 = vadd.f32 0.0, %v1529
        %1531 = vmatmul.f32.gmra.mxu0 %v1476
        %v1532 = vpop.f32.mrf.mxu0
        %v1533 = vadd.f32 0.0, %v1532
        %1534 = vmatmul.f32.gmra.mxu0 %v1477
        %v1535 = vpop.f32.mrf.mxu0
        %v1536 = vadd.f32 0.0, %v1535
        %1537 = vmatmul.f32.gmra.mxu0 %v1478
        %v1538 = vpop.f32.mrf.mxu0
        %v1539 = vadd.f32 0.0, %v1538
        %1540 = vmatmul.f32.gmra.mxu0 %v1479
        %v1541 = vpop.f32.mrf.mxu0
        %v1542 = vadd.f32 0.0, %v1541
        %1543 = vmatmul.f32.gmra.mxu0 %v1480
        %v1544 = vpop.f32.mrf.mxu0
        %v1545 = vadd.f32 0.0, %v1544
        %1546 = vmatmul.f32.gmra.mxu0 %v1481
        %v1547 = vpop.f32.mrf.mxu0
        %v1548 = vadd.f32 0.0, %v1547
        %1549 = vmatmul.f32.gmra.mxu0 %v1482
        %v1550 = vpop.f32.mrf.mxu0
        %v1551 = vadd.f32 0.0, %v1550
        %1552 = vmatmul.f32.gmra.mxu0 %v1483
        %v1553 = vpop.f32.mrf.mxu0
        %v1554 = vadd.f32 0.0, %v1553
        %1555 = vmatmul.f32.gmra.mxu0 %v1484
        %v1556 = vpop.f32.mrf.mxu0
        %v1557 = vadd.f32 0.0, %v1556
        %1558 = vmatmul.f32.gmra.mxu0 %v1485
        %v1559 = vpop.f32.mrf.mxu0
        %v1560 = vadd.f32 0.0, %v1559
        %1561 = vmatmul.f32.gmra.mxu0 %v1486
        %v1562 = vpop.f32.mrf.mxu0
        %v1563 = vadd.f32 0.0, %v1562
        %1564 = vmatmul.f32.gmra.mxu0 %v1487
        %v1565 = vpop.f32.mrf.mxu0
        %v1566 = vadd.f32 0.0, %v1565
        %1567 = vmatmul.f32.gmra.mxu0 %v1488
        %v1568 = vpop.f32.mrf.mxu0
        %v1569 = vadd.f32 0.0, %v1568
        %1570 = vdwg.mxu0
        %v1571 = vadd.f32 %v1457, %v1524
        %v1572 = vadd.f32 %v1458, %v1527
        %v1573 = vadd.f32 %v1459, %v1530
        %v1574 = vadd.f32 %v1460, %v1533
        %v1575 = vadd.f32 %v1461, %v1536
        %v1576 = vadd.f32 %v1462, %v1539
        %v1577 = vadd.f32 %v1463, %v1542
        %v1578 = vadd.f32 %v1464, %v1545
        %v1579 = vadd.f32 %v1465, %v1548
        %v1580 = vadd.f32 %v1466, %v1551
        %v1581 = vadd.f32 %v1467, %v1554
        %v1582 = vadd.f32 %v1468, %v1557
        %v1583 = vadd.f32 %v1469, %v1560
        %v1584 = vadd.f32 %v1470, %v1563
        %v1585 = vadd.f32 %v1471, %v1566
        %v1586 = vadd.f32 %v1472, %v1569
        %v1587 = vld [vmem:[#allocation2 + $0x31] sm:$0xff]
        %v1588 = vld [vmem:[#allocation2 + $0x39] sm:$0xff]
        %v1589 = vld [vmem:[#allocation2 + $0x41] sm:$0xff]
        %v1590 = vld [vmem:[#allocation2 + $0x49] sm:$0xff]
        %v1591 = vld [vmem:[#allocation2 + $0x51] sm:$0xff]
        %v1592 = vld [vmem:[#allocation2 + $0x59] sm:$0xff]
        %v1593 = vld [vmem:[#allocation2 + $0x61] sm:$0xff]
        %v1594 = vld [vmem:[#allocation2 + $0x69] sm:$0xff]
        %v1595 = vld [vmem:[#allocation2 + $0x71] sm:$0xff]
        %v1596 = vld [vmem:[#allocation2 + $0x79] sm:$0xff]
        %v1597 = vld [vmem:[#allocation2 + $0x81] sm:$0xff]
        %v1598 = vld [vmem:[#allocation2 + $0x89] sm:$0xff]
        %v1599 = vld [vmem:[#allocation2 + $0x91] sm:$0xff]
        %v1600 = vld [vmem:[#allocation2 + $0x99] sm:$0xff]
        %v1601 = vld [vmem:[#allocation2 + $0xa1] sm:$0xff]
        %v1602 = vld [vmem:[#allocation2 + $0xa9] sm:$0xff]
        %s1603 = scalar_lea.vmem [#allocation6], 1024
        %v1604 = vld [vmem:[%s1603] sm:$0xff]
        %v1605 = vld [vmem:[%s1603 + $0x8] sm:$0xff]
        %v1606 = vld [vmem:[%s1603 + $0x10] sm:$0xff]
        %v1607 = vld [vmem:[%s1603 + $0x18] sm:$0xff]
        %v1608 = vld [vmem:[%s1603 + $0x20] sm:$0xff]
        %v1609 = vld [vmem:[%s1603 + $0x28] sm:$0xff]
        %v1610 = vld [vmem:[%s1603 + $0x30] sm:$0xff]
        %v1611 = vld [vmem:[%s1603 + $0x38] sm:$0xff]
        %v1612 = vld [vmem:[%s1603 + $0x40] sm:$0xff]
        %v1613 = vld [vmem:[%s1603 + $0x48] sm:$0xff]
        %v1614 = vld [vmem:[%s1603 + $0x50] sm:$0xff]
        %v1615 = vld [vmem:[%s1603 + $0x58] sm:$0xff]
        %v1616 = vld [vmem:[%s1603 + $0x60] sm:$0xff]
        %v1617 = vld [vmem:[%s1603 + $0x68] sm:$0xff]
        %v1618 = vld [vmem:[%s1603 + $0x70] sm:$0xff]
        %v1619 = vld [vmem:[%s1603 + $0x78] sm:$0xff]
        %1620 = vmatpush.msra.mxu0 %v1619
        %1621 = vmatpush.msra.mxu0 %v1618
        %1622 = vmatpush.msra.mxu0 %v1617
        %1623 = vmatpush.msra.mxu0 %v1616
        %1624 = vmatpush.msra.mxu0 %v1615
        %1625 = vmatpush.msra.mxu0 %v1614
        %1626 = vmatpush.msra.mxu0 %v1613
        %1627 = vmatpush.msra.mxu0 %v1612
        %1628 = vmatpush.msra.mxu0 %v1611
        %1629 = vmatpush.msra.mxu0 %v1610
        %1630 = vmatpush.msra.mxu0 %v1609
        %1631 = vmatpush.msra.mxu0 %v1608
        %1632 = vmatpush.msra.mxu0 %v1607
        %1633 = vmatpush.msra.mxu0 %v1606
        %1634 = vmatpush.msra.mxu0 %v1605
        %1635 = vmatpush.msra.mxu0 %v1604
        %1636 = vmatmul.f32.gmra.mxu0 %v1587
        %v1637 = vpop.f32.mrf.mxu0
        %v1638 = vadd.f32 0.0, %v1637
        %1639 = vmatmul.f32.gmra.mxu0 %v1588
        %v1640 = vpop.f32.mrf.mxu0
        %v1641 = vadd.f32 0.0, %v1640
        %1642 = vmatmul.f32.gmra.mxu0 %v1589
        %v1643 = vpop.f32.mrf.mxu0
        %v1644 = vadd.f32 0.0, %v1643
        %1645 = vmatmul.f32.gmra.mxu0 %v1590
        %v1646 = vpop.f32.mrf.mxu0
        %v1647 = vadd.f32 0.0, %v1646
        %1648 = vmatmul.f32.gmra.mxu0 %v1591
        %v1649 = vpop.f32.mrf.mxu0
        %v1650 = vadd.f32 0.0, %v1649
        %1651 = vmatmul.f32.gmra.mxu0 %v1592
        %v1652 = vpop.f32.mrf.mxu0
        %v1653 = vadd.f32 0.0, %v1652
        %1654 = vmatmul.f32.gmra.mxu0 %v1593
        %v1655 = vpop.f32.mrf.mxu0
        %v1656 = vadd.f32 0.0, %v1655
        %1657 = vmatmul.f32.gmra.mxu0 %v1594
        %v1658 = vpop.f32.mrf.mxu0
        %v1659 = vadd.f32 0.0, %v1658
        %1660 = vmatmul.f32.gmra.mxu0 %v1595
        %v1661 = vpop.f32.mrf.mxu0
        %v1662 = vadd.f32 0.0, %v1661
        %1663 = vmatmul.f32.gmra.mxu0 %v1596
        %v1664 = vpop.f32.mrf.mxu0
        %v1665 = vadd.f32 0.0, %v1664
        %1666 = vmatmul.f32.gmra.mxu0 %v1597
        %v1667 = vpop.f32.mrf.mxu0
        %v1668 = vadd.f32 0.0, %v1667
        %1669 = vmatmul.f32.gmra.mxu0 %v1598
        %v1670 = vpop.f32.mrf.mxu0
        %v1671 = vadd.f32 0.0, %v1670
        %1672 = vmatmul.f32.gmra.mxu0 %v1599
        %v1673 = vpop.f32.mrf.mxu0
        %v1674 = vadd.f32 0.0, %v1673
        %1675 = vmatmul.f32.gmra.mxu0 %v1600
        %v1676 = vpop.f32.mrf.mxu0
        %v1677 = vadd.f32 0.0, %v1676
        %1678 = vmatmul.f32.gmra.mxu0 %v1601
        %v1679 = vpop.f32.mrf.mxu0
        %v1680 = vadd.f32 0.0, %v1679
        %1681 = vmatmul.f32.gmra.mxu0 %v1602
        %v1682 = vpop.f32.mrf.mxu0
        %v1683 = vadd.f32 0.0, %v1682
        %1684 = vdwg.mxu0
        %v1685 = vadd.f32 %v1571, %v1638
        %v1686 = vadd.f32 %v1572, %v1641
        %v1687 = vadd.f32 %v1573, %v1644
        %v1688 = vadd.f32 %v1574, %v1647
        %v1689 = vadd.f32 %v1575, %v1650
        %v1690 = vadd.f32 %v1576, %v1653
        %v1691 = vadd.f32 %v1577, %v1656
        %v1692 = vadd.f32 %v1578, %v1659
        %v1693 = vadd.f32 %v1579, %v1662
        %v1694 = vadd.f32 %v1580, %v1665
        %v1695 = vadd.f32 %v1581, %v1668
        %v1696 = vadd.f32 %v1582, %v1671
        %v1697 = vadd.f32 %v1583, %v1674
        %v1698 = vadd.f32 %v1584, %v1677
        %v1699 = vadd.f32 %v1585, %v1680
        %v1700 = vadd.f32 %v1586, %v1683
        %v1701 = vld [vmem:[%s5] sm:$0x1]
        %v1703 = vperm.slane %v1701, 0
        %v1705 = vadd.f32 %v1685, %v1703
        %v1706 = vadd.f32 %v1686, %v1703
        %v1707 = vadd.f32 %v1687, %v1703
        %v1708 = vadd.f32 %v1688, %v1703
        %v1709 = vadd.f32 %v1689, %v1703
        %v1710 = vadd.f32 %v1690, %v1703
        %v1711 = vadd.f32 %v1691, %v1703
        %v1712 = vadd.f32 %v1692, %v1703
        %v1713 = vadd.f32 %v1693, %v1703
        %v1714 = vadd.f32 %v1694, %v1703
        %v1715 = vadd.f32 %v1695, %v1703
        %v1716 = vadd.f32 %v1696, %v1703
        %v1717 = vadd.f32 %v1697, %v1703
        %v1718 = vadd.f32 %v1698, %v1703
        %v1719 = vadd.f32 %v1699, %v1703
        %v1720 = vadd.f32 %v1700, %v1703
        %v1721 = vmax.f32 %v1705, 0.0
        %v1722 = vmax.f32 %v1706, 0.0
        %v1723 = vmax.f32 %v1707, 0.0
        %v1724 = vmax.f32 %v1708, 0.0
        %v1725 = vmax.f32 %v1709, 0.0
        %v1726 = vmax.f32 %v1710, 0.0
        %v1727 = vmax.f32 %v1711, 0.0
        %v1728 = vmax.f32 %v1712, 0.0
        %v1729 = vmax.f32 %v1713, 0.0
        %v1730 = vmax.f32 %v1714, 0.0
        %v1731 = vmax.f32 %v1715, 0.0
        %v1732 = vmax.f32 %v1716, 0.0
        %v1733 = vmax.f32 %v1717, 0.0
        %v1734 = vmax.f32 %v1718, 0.0
        %v1735 = vmax.f32 %v1719, 0.0
        %v1736 = vmax.f32 %v1720, 0.0
        %v1737 = vld [vmem:[#allocation8] sm:$0xff]
        %v1738 = vld [vmem:[#allocation8 + $0x8] sm:$0xff]
        %v1739 = vld [vmem:[#allocation8 + $0x10] sm:$0xff]
        %v1740 = vld [vmem:[#allocation8 + $0x18] sm:$0xff]
        %v1741 = vld [vmem:[#allocation8 + $0x20] sm:$0xff]
        %v1742 = vld [vmem:[#allocation8 + $0x28] sm:$0xff]
        %v1743 = vld [vmem:[#allocation8 + $0x30] sm:$0xff]
        %v1744 = vld [vmem:[#allocation8 + $0x38] sm:$0xff]
        %v1745 = vld [vmem:[#allocation8 + $0x40] sm:$0xff]
        %v1746 = vld [vmem:[#allocation8 + $0x48] sm:$0xff]
        %v1747 = vld [vmem:[#allocation8 + $0x50] sm:$0xff]
        %v1748 = vld [vmem:[#allocation8 + $0x58] sm:$0xff]
        %v1749 = vld [vmem:[#allocation8 + $0x60] sm:$0xff]
        %v1750 = vld [vmem:[#allocation8 + $0x68] sm:$0xff]
        %v1751 = vld [vmem:[#allocation8 + $0x70] sm:$0xff]
        %v1752 = vld [vmem:[#allocation8 + $0x78] sm:$0xff]
        %v1753 = vld [vmem:[%s7] sm:$0x1]
        %v1755 = vperm.slane %v1753, 0
        %1757 = vmatpush.msra.mxu0 %v1752
        %1758 = vmatpush.msra.mxu0 %v1751
        %1759 = vmatpush.msra.mxu0 %v1750
        %1760 = vmatpush.msra.mxu0 %v1749
        %1761 = vmatpush.msra.mxu0 %v1748
        %1762 = vmatpush.msra.mxu0 %v1747
        %1763 = vmatpush.msra.mxu0 %v1746
        %1764 = vmatpush.msra.mxu0 %v1745
        %1765 = vmatpush.msra.mxu0 %v1744
        %1766 = vmatpush.msra.mxu0 %v1743
        %1767 = vmatpush.msra.mxu0 %v1742
        %1768 = vmatpush.msra.mxu0 %v1741
        %1769 = vmatpush.msra.mxu0 %v1740
        %1770 = vmatpush.msra.mxu0 %v1739
        %1771 = vmatpush.msra.mxu0 %v1738
        %1772 = vmatpush.msra.mxu0 %v1737
        %1773 = vmatmul.f32.gmra.mxu0 %v1721
        %v1774 = vpop.f32.mrf.mxu0
        %v1775 = vadd.f32 %v1755, %v1774
        %1776 = vmatmul.f32.gmra.mxu0 %v1722
        %v1777 = vpop.f32.mrf.mxu0
        %v1778 = vadd.f32 %v1755, %v1777
        %1779 = vmatmul.f32.gmra.mxu0 %v1723
        %v1780 = vpop.f32.mrf.mxu0
        %v1781 = vadd.f32 %v1755, %v1780
        %1782 = vmatmul.f32.gmra.mxu0 %v1724
        %v1783 = vpop.f32.mrf.mxu0
        %v1784 = vadd.f32 %v1755, %v1783
        %1785 = vmatmul.f32.gmra.mxu0 %v1725
        %v1786 = vpop.f32.mrf.mxu0
        %v1787 = vadd.f32 %v1755, %v1786
        %1788 = vmatmul.f32.gmra.mxu0 %v1726
        %v1789 = vpop.f32.mrf.mxu0
        %v1790 = vadd.f32 %v1755, %v1789
        %1791 = vmatmul.f32.gmra.mxu0 %v1727
        %v1792 = vpop.f32.mrf.mxu0
        %v1793 = vadd.f32 %v1755, %v1792
        %1794 = vmatmul.f32.gmra.mxu0 %v1728
        %v1795 = vpop.f32.mrf.mxu0
        %v1796 = vadd.f32 %v1755, %v1795
        %1797 = vmatmul.f32.gmra.mxu0 %v1729
        %v1798 = vpop.f32.mrf.mxu0
        %v1799 = vadd.f32 %v1755, %v1798
        %1800 = vmatmul.f32.gmra.mxu0 %v1730
        %v1801 = vpop.f32.mrf.mxu0
        %v1802 = vadd.f32 %v1755, %v1801
        %1803 = vmatmul.f32.gmra.mxu0 %v1731
        %v1804 = vpop.f32.mrf.mxu0
        %v1805 = vadd.f32 %v1755, %v1804
        %1806 = vmatmul.f32.gmra.mxu0 %v1732
        %v1807 = vpop.f32.mrf.mxu0
        %v1808 = vadd.f32 %v1755, %v1807
        %1809 = vmatmul.f32.gmra.mxu0 %v1733
        %v1810 = vpop.f32.mrf.mxu0
        %v1811 = vadd.f32 %v1755, %v1810
        %1812 = vmatmul.f32.gmra.mxu0 %v1734
        %v1813 = vpop.f32.mrf.mxu0
        %v1814 = vadd.f32 %v1755, %v1813
        %1815 = vmatmul.f32.gmra.mxu0 %v1735
        %v1816 = vpop.f32.mrf.mxu0
        %v1817 = vadd.f32 %v1755, %v1816
        %1818 = vmatmul.f32.gmra.mxu0 %v1736
        %v1819 = vpop.f32.mrf.mxu0
        %v1820 = vadd.f32 %v1755, %v1819
        %1821 = vdwg.mxu0
        %v1822 = vld [vmem:[%s315 + $0x20] sm:$0xff]
        %v1823 = vld [vmem:[%s315 + $0x28] sm:$0xff]
        %v1824 = vld [vmem:[%s315 + $0x30] sm:$0xff]
        %v1825 = vld [vmem:[%s315 + $0x38] sm:$0xff]
        %v1826 = vld [vmem:[%s315 + $0x40] sm:$0xff]
        %v1827 = vld [vmem:[%s315 + $0x48] sm:$0xff]
        %v1828 = vld [vmem:[%s315 + $0x50] sm:$0xff]
        %v1829 = vld [vmem:[%s315 + $0x58] sm:$0xff]
        %v1830 = vld [vmem:[%s315 + $0x60] sm:$0xff]
        %v1831 = vld [vmem:[%s315 + $0x68] sm:$0xff]
        %v1832 = vld [vmem:[%s315 + $0x70] sm:$0xff]
        %v1833 = vld [vmem:[%s315 + $0x78] sm:$0xff]
        %v1834 = vld [vmem:[%s315 + $0x80] sm:$0xff]
        %v1835 = vld [vmem:[%s315 + $0x88] sm:$0xff]
        %v1836 = vld [vmem:[%s315 + $0x90] sm:$0xff]
        %v1837 = vld [vmem:[%s315 + $0x98] sm:$0xff]
        %v1838 = vadd.f32 %v1775, %v1822
        %v1839 = vadd.f32 %v1778, %v1823
        %v1840 = vadd.f32 %v1781, %v1824
        %v1841 = vadd.f32 %v1784, %v1825
        %v1842 = vadd.f32 %v1787, %v1826
        %v1843 = vadd.f32 %v1790, %v1827
        %v1844 = vadd.f32 %v1793, %v1828
        %v1845 = vadd.f32 %v1796, %v1829
        %v1846 = vadd.f32 %v1799, %v1830
        %v1847 = vadd.f32 %v1802, %v1831
        %v1848 = vadd.f32 %v1805, %v1832
        %v1849 = vadd.f32 %v1808, %v1833
        %v1850 = vadd.f32 %v1811, %v1834
        %v1851 = vadd.f32 %v1814, %v1835
        %v1852 = vadd.f32 %v1817, %v1836
        %v1853 = vadd.f32 %v1820, %v1837
        %v1854 = vmax.f32 %v1838, 0.0
        %v1855 = vmax.f32 %v1839, 0.0
        %v1856 = vmax.f32 %v1840, 0.0
        %v1857 = vmax.f32 %v1841, 0.0
        %v1858 = vmax.f32 %v1842, 0.0
        %v1859 = vmax.f32 %v1843, 0.0
        %v1860 = vmax.f32 %v1844, 0.0
        %v1861 = vmax.f32 %v1845, 0.0
        %v1862 = vmax.f32 %v1846, 0.0
        %v1863 = vmax.f32 %v1847, 0.0
        %v1864 = vmax.f32 %v1848, 0.0
        %v1865 = vmax.f32 %v1849, 0.0
        %v1866 = vmax.f32 %v1850, 0.0
        %v1867 = vmax.f32 %v1851, 0.0
        %v1868 = vmax.f32 %v1852, 0.0
        %v1869 = vmax.f32 %v1853, 0.0
        %1870 = vst [vmem:[%s358] sm:$0xff] %v1854
        %1871 = vst [vmem:[%s358 + $0x8] sm:$0xff] %v1855
        %1872 = vst [vmem:[%s358 + $0x10] sm:$0xff] %v1856
        %1873 = vst [vmem:[%s358 + $0x18] sm:$0xff] %v1857
        %1874 = vst [vmem:[%s358 + $0x20] sm:$0xff] %v1858
        %1875 = vst [vmem:[%s358 + $0x28] sm:$0xff] %v1859
        %1876 = vst [vmem:[%s358 + $0x30] sm:$0xff] %v1860
        %1877 = vst [vmem:[%s358 + $0x38] sm:$0xff] %v1861
        %1878 = vst [vmem:[%s358 + $0x40] sm:$0xff] %v1862
        %1879 = vst [vmem:[%s358 + $0x48] sm:$0xff] %v1863
        %1880 = vst [vmem:[%s358 + $0x50] sm:$0xff] %v1864
        %1881 = vst [vmem:[%s358 + $0x58] sm:$0xff] %v1865
        %1882 = vst [vmem:[%s358 + $0x60] sm:$0xff] %v1866
        %1883 = vst [vmem:[%s358 + $0x68] sm:$0xff] %v1867
        %1884 = vst [vmem:[%s358 + $0x70] sm:$0xff] %v1868
        %1885 = vst [vmem:[%s358 + $0x78] sm:$0xff] %v1869
        %s1886 = sand.u32 %s207, 1
        %s1887 = scalar_lea.sflag [#allocation5], %s1886
        %s1888 = sand.u32 %s207, 1
        %s1889 = smul.addr %s1888, 128
        %s1890 = scalar_lea.vmem [#allocation9], %s1889
        // Predicated region
        $region65: #{tpu_custom_call.1} parent=51 // pred_check
          %p1891 = pneg %p217
        $region66: #{tpu_custom_call.1} parent=51 // pred_check_branch
          %1893 = sbr.rel (%p1891) target = $region68
        $region67: #{tpu_custom_call.1} parent=51 // pred_region
          %1895 = vsyncadd %s1887, 0
          %s1896 = smul.addr %s26, 16
          %s1897 = smul.addr %s1896, 8
          %s1898 = scalar_lea.hbm %s8, %s1897
          %s1899 = sshll.u32 %s1890, 4
          %s1900 = int_to_ptr.vmem [resolvable:$true] %s1899
          %s1901 = sshll.u32 %s1898, 4
          %s1902 = int_to_ptr.hbm [resolvable:$true] %s1901
          %1907 = dma.vmem_to_hbm [thread:$0]  %s1900, 2048, %s1902, %s1887, 128, 128, 8
        $region68: #{tpu_custom_call.1} parent=51 // pred_fallthru
          _
      $region52: #{tpu_custom_call.1} parent=5 // pred_fallthru
        _
      %p1908 = scmp.le.s32.totalorder 2, %s21
      // Predicated region
      $region69: #{tpu_custom_call.1} parent=5 // pred_check
        %p1909 = pneg %p1908
      $region70: #{tpu_custom_call.1} parent=5 // pred_check_branch
        %1911 = sbr.rel (%p1909) target = $region72
      $region71: #{tpu_custom_call.1} parent=5 // pred_region
        %s1912 = ssub.s32 %s21, 2
        // Predicated region
        $region73: #{tpu_custom_call.1} parent=71 // pred_check
          %p1913 = pneg %p223
        $region74: #{tpu_custom_call.1} parent=71 // pred_check_branch
          %1915 = sbr.rel (%p1913) target = $region76
        $region75: #{tpu_custom_call.1} parent=71 // pred_region
          %s1916 = sand.u32 %s208, 1
          %s1917 = scalar_lea.sflag [#allocation5], %s1916
          %s1918 = sand.u32 %s208, 1
          %s1919 = smul.addr %s1918, 128
          %s1920 = scalar_lea.vmem [#allocation9], %s1919
          %1922 = dma.done %s1917, 2048
        $region76: #{tpu_custom_call.1} parent=71 // pred_fallthru
          _
      $region72: #{tpu_custom_call.1} parent=5 // pred_fallthru
        _
    $region6: #{tpu_custom_call.1} parent=1 // loop_footer
      %s25 = sadd.s32 1, %s21
    $region7: #{tpu_custom_call.1} parent=1 // loop_footer_branch
      %20 = sbr.rel target = $region3
    $region8: #{tpu_custom_call.1} parent=1 // loop_exit
      _
    %1923 = vsyncpa [#allocation4], 1
    %s1924 = scalar_lea.sflag [#allocation4], 1
    %1925 = vsyncpa %s1924, 1
    %1926 = vsyncpa [#allocation7], 1
    %1927 = vsyncpa [#allocation5], 1
    %s1928 = scalar_lea.sflag [#allocation5], 1
    %1929 = vsyncpa %s1928, 1

</llo_original>
